<compile_context>
chip_gen: v7x
topology: tpu7x:2x2x1
jax: 0.10.0
libtpu: 0.0.40
codegen_flags: <defaults>
</compile_context>

<pallas_src>
import math

import jax
import jax.numpy as jnp
from jax.experimental import pallas as pl
from jax.experimental.pallas import tpu as pltpu


# ---------------------------------------------------------------------------
# Layer plan: mirrors VQDecoderV5.__init__ exactly.
# Each entry: (cin, cout, apply_leaky_after, residual_tag)
#   residual_tag: "save" -> remember the input of this conv as the residual
#                 "add"  -> add the remembered residual after this conv
# ---------------------------------------------------------------------------
def build_layer_plan(vae_length, vae_layer, vae_test_dim, n_resblk=2):
    n_up = vae_layer
    channels = [vae_length] * n_up + [vae_test_dim]
    input_size = vae_length
    plan = []
    if input_size != channels[0]:
        plan.append((input_size, channels[0], False, None))
    for _ in range(n_resblk):
        plan.append((channels[0], channels[0], True, "save"))   # conv1 + leaky
        plan.append((channels[0], channels[0], False, "add"))   # conv2 + residual
    for i in range(n_up):
        plan.append((channels[i], channels[i + 1], True, None))  # up conv + leaky
    plan.append((channels[-1], channels[-1], False, None))       # final conv
    return plan


# ---------------------------------------------------------------------------
# Fused kernel: runs every layer on a (C, G*Tpad) channels-first slab, where
# G batches are folded onto the lane axis.
# ---------------------------------------------------------------------------
def _make_fused_kernel(plan, n_batch_fold, t_true, t_pad,
                       compute_dtype=jnp.bfloat16, leaky_slope=0.2):
    n_layers = len(plan)
    G = n_batch_fold
    W = G * t_pad                     # folded lane width (multiple of 128)

    def kernel(x_ref, *rest):
        w_refs = rest[:n_layers]                       # each (3, Cout, Cin) bf16
        b_refs = rest[n_layers:2 * n_layers]           # each (Cout, 1) f32
        out_ref = rest[2 * n_layers]                   # (G, Cout_final, T)

        # ---- hoisted once for all layers -----------------------------------
        # Per-batch time index along the folded lane axis (no integer mod:
        # just tile the single-batch iota G times).
        iota_t = jax.lax.broadcasted_iota(jnp.int32, (1, t_pad), 1)
        tcol = jnp.concatenate([iota_t] * G, axis=1)            # (1, W)
        m_first = tcol == 0                                     # t == 0 per batch
        m_end = tcol >= (t_true - 1)                            # t >= T-1 (+ lane pad)

        # Fold the G batches of this grid step onto the lane axis: (Cin, W).
        h = jnp.concatenate([x_ref[g] for g in range(G)], axis=1)

        res = None
        for li, (_cin, _cout, leaky, res_tag) in enumerate(plan):
            if res_tag == "save":
                res = h                                          # bf16 residual
            w_ref = w_refs[li]
            # Three K=Cin MXU dots with f32 accumulation (output-shift form:
            # no per-layer tap concat, no per-layer bf16 re-pack of taps).
            z0 = jnp.dot(w_ref[0], h, preferred_element_type=jnp.float32)
            z1 = jnp.dot(w_ref[1], h, preferred_element_type=jnp.float32)
            z2 = jnp.dot(w_ref[2], h, preferred_element_type=jnp.float32)
            # "Same" zero-padded conv:  y[:, t] = z0[:, t-1] + z1[:, t] + z2[:, t+1]
            # pltpu.roll needs a non-negative shift: roll-by-1 shifts right
            # (brings t-1 into t), roll-by-(W-1) shifts left (brings t+1 into t).
            # Boundary / cross-batch wraparound columns are masked to zero, so
            # lane-padding garbage never flows back into real columns.
            y = z1 + b_refs[li][...]
            y = y + jnp.where(m_first, 0.0, pltpu.roll(z0, 1, 1))
            y = y + jnp.where(m_end, 0.0, pltpu.roll(z2, W - 1, 1))
            if leaky:
                y = jnp.where(y > 0.0, y, leaky_slope * y)
            if res_tag == "add":
                y = y + res.astype(jnp.float32)
            if li == n_layers - 1:
                # Store only the true T columns per batch (no lane padding to HBM).
                for g in range(G):
                    out_ref[g] = y[:, g * t_pad:g * t_pad + t_true].astype(out_ref.dtype)
            else:
                h = y.astype(compute_dtype)                      # bf16-resident carry

    return kernel


# ---------------------------------------------------------------------------
# Parameter init: xavier_normal weights (matching nn.init.xavier_normal_ on a
# (Cout, Cin, 3) conv weight), zero bias.  Weights stored as (3, Cout, Cin)
# in compute_dtype (tap k multiplies x[t-1+k]); biases as (Cout, 1) f32.
# ---------------------------------------------------------------------------
def init_vq_decoder_params(key, vae_length, vae_layer, vae_test_dim,
                           compute_dtype=jnp.bfloat16):
    plan = build_layer_plan(vae_length, vae_layer, vae_test_dim)
    keys = jax.random.split(key, len(plan))
    weights, biases = [], []
    for k, (cin, cout, _leaky, _res) in zip(keys, plan):
        std = math.sqrt(2.0 / ((cin + cout) * 3))               # fan_in/out = C*3
        w_torch = std * jax.random.normal(k, (cout, cin, 3), dtype=jnp.float32)
        weights.append(jnp.transpose(w_torch, (2, 0, 1)).astype(compute_dtype))
        biases.append(jnp.zeros((cout, 1), dtype=jnp.float32))
    return {"plan": plan, "weights": weights, "biases": biases}


def _pick_batch_fold(batch, t_pad, lane_target=512):
    """Largest divisor G of `batch` such that G * t_pad <= max(t_pad, lane_target)."""
    limit = max(t_pad, lane_target)
    best = 1
    for g in range(1, batch + 1):
        if batch % g == 0 and g * t_pad <= limit:
            best = g
    return best


# ---------------------------------------------------------------------------
# Forward pass wrapper: one pallas_call for the whole network.
# Input/output interface matches the module: (B, T, C) in, (B, T, C_out) out.
# ---------------------------------------------------------------------------
def vq_decoder_v5_forward(inputs, params, *, compute_dtype=jnp.bfloat16):
    plan = params["plan"]
    weights = params["weights"]
    biases = params["biases"]

    B, T, c_in = inputs.shape
    assert c_in == plan[0][0], (c_in, plan[0][0])
    c_out = plan[-1][1]
    t_pad = ((T + 127) // 128) * 128                 # lane-dense time axis
    G = _pick_batch_fold(B, t_pad)                   # batches folded per grid step

    # Boundary layout work (mirrors the module's permute): one fused XLA copy,
    # emitted in bf16 so the extra HBM pass is half-width.
    x = jnp.transpose(inputs, (0, 2, 1)).astype(compute_dtype)   # (B, Cin, T)
    if t_pad != T:
        x = jnp.pad(x, ((0, 0), (0, 0), (0, t_pad - T)))

    kernel = _make_fused_kernel(plan, G, T, t_pad, compute_dtype=compute_dtype)

    in_specs = [pl.BlockSpec((G, c_in, t_pad), lambda i: (i, 0, 0))]
    # Weights/biases: constant index maps -> fetched once, stay resident.
    # (Single-buffering them via pl.Buffered(1) would save a little VMEM; left
    #  at the default since they are tiny here.)
    in_specs += [pl.BlockSpec(tuple(w.shape), lambda i: (0, 0, 0)) for w in weights]
    in_specs += [pl.BlockSpec(tuple(b.shape), lambda i: (0, 0)) for b in biases]

    # Rough VMEM budget: weights/biases + live f32 intermediates + I/O blocks.
    wb_bytes = sum(int(w.size) * w.dtype.itemsize for w in weights)
    wb_bytes += sum(int(b.size) * b.dtype.itemsize for b in biases)
    c_max = max(max(ci, co) for ci, co, _, _ in plan)
    act_bytes = 10 * c_max * G * t_pad * 4
    io_bytes = 2 * (G * c_in * t_pad * 2 + G * c_out * T * 4)
    vmem_limit = max(32 * 2**20,
                     min(96 * 2**20, int(1.5 * (2 * wb_bytes + act_bytes + io_bytes))))
    # NOTE: on v7x (64 MiB physical VMEM) prefer time-tiling over letting this
    # estimate grow past ~48 MiB; on v5e/v6e (128 MiB) the cap above is fine.

    out_nct = pl.pallas_call(
        kernel,
        out_shape=jax.ShapeDtypeStruct((B, c_out, T), inputs.dtype),
        grid=(B // G,),
        in_specs=in_specs,
        out_specs=pl.BlockSpec((G, c_out, T), lambda i: (i, 0, 0)),
        compiler_params=pltpu.CompilerParams(
            dimension_semantics=("parallel",),
            vmem_limit_bytes=vmem_limit,
        ),
    )(x, *weights, *biases)

    return jnp.transpose(out_nct, (0, 2, 1))         # (B, T, Cout)


# ---------------------------------------------------------------------------
# Pure-JAX reference with the SAME precision policy (bf16-resident carries,
# bf16 MXU inputs, f32 accumulation + epilogue) — verifies shifts, masking,
# residuals and layout.
# ---------------------------------------------------------------------------
def vq_decoder_v5_reference(inputs, params, *, compute_dtype=jnp.bfloat16):
    plan = params["plan"]
    weights = params["weights"]
    biases = params["biases"]
    n_layers = len(plan)

    h = jnp.transpose(inputs, (0, 2, 1)).astype(compute_dtype)   # (B, C, T)
    T = h.shape[-1]
    res = None
    for li, (_cin, _cout, leaky, res_tag) in enumerate(plan):
        if res_tag == "save":
            res = h
        w = weights[li]                                          # (3, Cout, Cin)
        z0 = jnp.einsum("oc,bct->bot", w[0], h, preferred_element_type=jnp.float32)
        z1 = jnp.einsum("oc,bct->bot", w[1], h, preferred_element_type=jnp.float32)
        z2 = jnp.einsum("oc,bct->bot", w[2], h, preferred_element_type=jnp.float32)
        y = z1 + biases[li][None]
        y = y + jnp.pad(z0, ((0, 0), (0, 0), (1, 0)))[..., :T]   # x[t-1] tap
        y = y + jnp.pad(z2, ((0, 0), (0, 0), (0, 1)))[..., 1:]   # x[t+1] tap
        if leaky:
            y = jnp.where(y > 0.0, y, 0.2 * y)
        if res_tag == "add":
            y = y + res.astype(jnp.float32)
        if li == n_layers - 1:
            return jnp.transpose(y, (0, 2, 1)).astype(inputs.dtype)
        h = y.astype(compute_dtype)


if __name__ == "__main__":
    # Small, module-consistent shapes.
    B, T = 2, 8
    vae_length = 32      # args.vae_length (input / hidden channel dim)
    vae_layer = 2        # args.vae_layer  (number of "up" convs)
    vae_test_dim = 16    # args.vae_test_dim (output channel dim)

    key = jax.random.PRNGKey(0)
    k_in, k_par = jax.random.split(key)

    inputs = jax.random.normal(k_in, (B, T, vae_length), dtype=jnp.float32)
    params = init_vq_decoder_params(k_par, vae_length, vae_layer, vae_test_dim)

    fwd = jax.jit(lambda x: vq_decoder_v5_forward(x, params))
    out = jax.block_until_ready(fwd(inputs))

    ref = jax.block_until_ready(vq_decoder_v5_reference(inputs, params))

    assert out.shape == (B, T, vae_test_dim), out.shape
    assert bool(jnp.all(jnp.isfinite(out)))
    max_err = float(jnp.max(jnp.abs(out - ref)))
    assert max_err < 2e-2, f"max abs error vs reference: {max_err}"
    print("KERNEL_OK")
</pallas_src>

<mosaic_0001>
module attributes {stable_mosaic.version = 11 : i64} {
  func.func @kernel(%arg0: i32, %arg1: memref<2x32x128xbf16, #tpu.memory_space<vmem>>, %arg2: memref<3x32x32xbf16, #tpu.memory_space<vmem>>, %arg3: memref<3x32x32xbf16, #tpu.memory_space<vmem>>, %arg4: memref<3x32x32xbf16, #tpu.memory_space<vmem>>, %arg5: memref<3x32x32xbf16, #tpu.memory_space<vmem>>, %arg6: memref<3x32x32xbf16, #tpu.memory_space<vmem>>, %arg7: memref<3x16x32xbf16, #tpu.memory_space<vmem>>, %arg8: memref<3x16x16xbf16, #tpu.memory_space<vmem>>, %arg9: memref<32x1xf32, #tpu.memory_space<vmem>>, %arg10: memref<32x1xf32, #tpu.memory_space<vmem>>, %arg11: memref<32x1xf32, #tpu.memory_space<vmem>>, %arg12: memref<32x1xf32, #tpu.memory_space<vmem>>, %arg13: memref<32x1xf32, #tpu.memory_space<vmem>>, %arg14: memref<16x1xf32, #tpu.memory_space<vmem>>, %arg15: memref<16x1xf32, #tpu.memory_space<vmem>>, %arg16: memref<2x16x8xf32, #tpu.memory_space<vmem>>) attributes {dimension_semantics = [#tpu.dimension_semantics<parallel>], iteration_bounds = array<i64: 1>, scalar_prefetch = 0 : i64, scratch_operands = 0 : i64, tpu.core_type = #tpu.core_type<tc>, window_params = [{transform_indices = @transform_0, window_bounds = array<i64: 2, 32, 128>}, {pipeline_mode = #tpu.pipeline_mode<synchronous>, transform_indices = @transform_1, window_bounds = array<i64: 3, 32, 32>}, {pipeline_mode = #tpu.pipeline_mode<synchronous>, transform_indices = @transform_2, window_bounds = array<i64: 3, 32, 32>}, {pipeline_mode = #tpu.pipeline_mode<synchronous>, transform_indices = @transform_3, window_bounds = array<i64: 3, 32, 32>}, {pipeline_mode = #tpu.pipeline_mode<synchronous>, transform_indices = @transform_4, window_bounds = array<i64: 3, 32, 32>}, {pipeline_mode = #tpu.pipeline_mode<synchronous>, transform_indices = @transform_5, window_bounds = array<i64: 3, 32, 32>}, {pipeline_mode = #tpu.pipeline_mode<synchronous>, transform_indices = @transform_6, window_bounds = array<i64: 3, 16, 32>}, {pipeline_mode = #tpu.pipeline_mode<synchronous>, transform_indices = @transform_7, window_bounds = array<i64: 3, 16, 16>}, {pipeline_mode = #tpu.pipeline_mode<synchronous>, transform_indices = @transform_8, window_bounds = array<i64: 32, 1>}, {pipeline_mode = #tpu.pipeline_mode<synchronous>, transform_indices = @transform_9, window_bounds = array<i64: 32, 1>}, {pipeline_mode = #tpu.pipeline_mode<synchronous>, transform_indices = @transform_10, window_bounds = array<i64: 32, 1>}, {pipeline_mode = #tpu.pipeline_mode<synchronous>, transform_indices = @transform_11, window_bounds = array<i64: 32, 1>}, {pipeline_mode = #tpu.pipeline_mode<synchronous>, transform_indices = @transform_12, window_bounds = array<i64: 32, 1>}, {pipeline_mode = #tpu.pipeline_mode<synchronous>, transform_indices = @transform_13, window_bounds = array<i64: 16, 1>}, {pipeline_mode = #tpu.pipeline_mode<synchronous>, transform_indices = @transform_14, window_bounds = array<i64: 16, 1>}, {transform_indices = @transform_15, window_bounds = array<i64: 2, 16, 8>}]} {
    %0 = tpu.iota {dimensions = array<i32: 1>} : vector<1x128xi32>
    %1 = tpu.concatenate %0, %0 in 1 : vector<1x128xi32>, vector<1x128xi32> -> vector<1x256xi32>
    %c0_i32 = arith.constant 0 : i32
    %2 = vector.broadcast %c0_i32 : i32 to vector<1x256xi32>
    %3 = arith.cmpi eq, %1, %2 : vector<1x256xi32>
    %c7_i32 = arith.constant 7 : i32
    %4 = vector.broadcast %c7_i32 : i32 to vector<1x256xi32>
    %5 = arith.cmpi sge, %1, %4 : vector<1x256xi32>
    %c0 = arith.constant 0 : index
    %c0_0 = arith.constant 0 : index
    %c0_1 = arith.constant 0 : index
    %6 = vector.load %arg1[%c0, %c0_0, %c0_1] : memref<2x32x128xbf16, #tpu.memory_space<vmem>>, vector<1x32x128xbf16>
    %7 = vector.shape_cast %6 : vector<1x32x128xbf16> to vector<32x128xbf16>
    %c1 = arith.constant 1 : index
    %c0_2 = arith.constant 0 : index
    %c0_3 = arith.constant 0 : index
    %8 = vector.load %arg1[%c1, %c0_2, %c0_3] : memref<2x32x128xbf16, #tpu.memory_space<vmem>>, vector<1x32x128xbf16>
    %9 = vector.shape_cast %8 : vector<1x32x128xbf16> to vector<32x128xbf16>
    %10 = tpu.concatenate %7, %9 in 1 : vector<32x128xbf16>, vector<32x128xbf16> -> vector<32x256xbf16>
    %c0_4 = arith.constant 0 : index
    %c0_5 = arith.constant 0 : index
    %c0_6 = arith.constant 0 : index
    %11 = vector.load %arg2[%c0_4, %c0_5, %c0_6] : memref<3x32x32xbf16, #tpu.memory_space<vmem>>, vector<1x32x32xbf16>
    %12 = vector.shape_cast %11 : vector<1x32x32xbf16> to vector<32x32xbf16>
    %cst = arith.constant dense<0.000000e+00> : vector<32x256xf32>
    %13 = tpu.matmul %12, %10, %cst {dimension_numbers = #tpu.dot_dimension_numbers<[1], [0], [0], [1], [0, 0, 1, 1], [], []>} : vector<32x32xbf16>, vector<32x256xbf16>, vector<32x256xf32> -> vector<32x256xf32>
    %c1_7 = arith.constant 1 : index
    %c0_8 = arith.constant 0 : index
    %c0_9 = arith.constant 0 : index
    %14 = vector.load %arg2[%c1_7, %c0_8, %c0_9] : memref<3x32x32xbf16, #tpu.memory_space<vmem>>, vector<1x32x32xbf16>
    %15 = vector.shape_cast %14 : vector<1x32x32xbf16> to vector<32x32xbf16>
    %cst_10 = arith.constant dense<0.000000e+00> : vector<32x256xf32>
    %16 = tpu.matmul %15, %10, %cst_10 {dimension_numbers = #tpu.dot_dimension_numbers<[1], [0], [0], [1], [0, 0, 1, 1], [], []>} : vector<32x32xbf16>, vector<32x256xbf16>, vector<32x256xf32> -> vector<32x256xf32>
    %c2 = arith.constant 2 : index
    %c0_11 = arith.constant 0 : index
    %c0_12 = arith.constant 0 : index
    %17 = vector.load %arg2[%c2, %c0_11, %c0_12] : memref<3x32x32xbf16, #tpu.memory_space<vmem>>, vector<1x32x32xbf16>
    %18 = vector.shape_cast %17 : vector<1x32x32xbf16> to vector<32x32xbf16>
    %cst_13 = arith.constant dense<0.000000e+00> : vector<32x256xf32>
    %19 = tpu.matmul %18, %10, %cst_13 {dimension_numbers = #tpu.dot_dimension_numbers<[1], [0], [0], [1], [0, 0, 1, 1], [], []>} : vector<32x32xbf16>, vector<32x256xbf16>, vector<32x256xf32> -> vector<32x256xf32>
    %c0_14 = arith.constant 0 : index
    %c0_15 = arith.constant 0 : index
    %20 = vector.load %arg9[%c0_14, %c0_15] : memref<32x1xf32, #tpu.memory_space<vmem>>, vector<32x1xf32>
    %21 = vector.broadcast %20 : vector<32x1xf32> to vector<32x256xf32>
    %22 = arith.addf %16, %21 : vector<32x256xf32>
    %c1_i32 = arith.constant 1 : i32
    %23 = tpu.dynamic_rotate %13 by %c1_i32 dim 1 : vector<32x256xf32>, i32 -> vector<32x256xf32>
    %cst_16 = arith.constant 0.000000e+00 : f32
    %24 = vector.shape_cast %3 : vector<1x256xi1> to vector<1x256xi1>
    %25 = vector.broadcast %24 : vector<1x256xi1> to vector<32x256xi1>
    %26 = vector.broadcast %cst_16 : f32 to vector<32x256xf32>
    %27 = arith.select %25, %26, %23 : vector<32x256xi1>, vector<32x256xf32>
    %28 = arith.addf %22, %27 : vector<32x256xf32>
    %c255_i32 = arith.constant 255 : i32
    %29 = tpu.dynamic_rotate %19 by %c255_i32 dim 1 : vector<32x256xf32>, i32 -> vector<32x256xf32>
    %cst_17 = arith.constant 0.000000e+00 : f32
    %30 = vector.shape_cast %5 : vector<1x256xi1> to vector<1x256xi1>
    %31 = vector.broadcast %30 : vector<1x256xi1> to vector<32x256xi1>
    %32 = vector.broadcast %cst_17 : f32 to vector<32x256xf32>
    %33 = arith.select %31, %32, %29 : vector<32x256xi1>, vector<32x256xf32>
    %34 = arith.addf %28, %33 : vector<32x256xf32>
    %cst_18 = arith.constant 0.000000e+00 : f32
    %35 = vector.broadcast %cst_18 : f32 to vector<32x256xf32>
    %36 = arith.cmpf ogt, %34, %35 : vector<32x256xf32>
    %cst_19 = arith.constant 2.000000e-01 : f32
    %37 = vector.broadcast %cst_19 : f32 to vector<32x256xf32>
    %38 = arith.mulf %37, %34 : vector<32x256xf32>
    %39 = arith.select %36, %34, %38 : vector<32x256xi1>, vector<32x256xf32>
    %40 = arith.truncf %39 : vector<32x256xf32> to vector<32x256xbf16>
    %c0_20 = arith.constant 0 : index
    %c0_21 = arith.constant 0 : index
    %c0_22 = arith.constant 0 : index
    %41 = vector.load %arg3[%c0_20, %c0_21, %c0_22] : memref<3x32x32xbf16, #tpu.memory_space<vmem>>, vector<1x32x32xbf16>
    %42 = vector.shape_cast %41 : vector<1x32x32xbf16> to vector<32x32xbf16>
    %cst_23 = arith.constant dense<0.000000e+00> : vector<32x256xf32>
    %43 = tpu.matmul %42, %40, %cst_23 {dimension_numbers = #tpu.dot_dimension_numbers<[1], [0], [0], [1], [0, 0, 1, 1], [], []>} : vector<32x32xbf16>, vector<32x256xbf16>, vector<32x256xf32> -> vector<32x256xf32>
    %c1_24 = arith.constant 1 : index
    %c0_25 = arith.constant 0 : index
    %c0_26 = arith.constant 0 : index
    %44 = vector.load %arg3[%c1_24, %c0_25, %c0_26] : memref<3x32x32xbf16, #tpu.memory_space<vmem>>, vector<1x32x32xbf16>
    %45 = vector.shape_cast %44 : vector<1x32x32xbf16> to vector<32x32xbf16>
    %cst_27 = arith.constant dense<0.000000e+00> : vector<32x256xf32>
    %46 = tpu.matmul %45, %40, %cst_27 {dimension_numbers = #tpu.dot_dimension_numbers<[1], [0], [0], [1], [0, 0, 1, 1], [], []>} : vector<32x32xbf16>, vector<32x256xbf16>, vector<32x256xf32> -> vector<32x256xf32>
    %c2_28 = arith.constant 2 : index
    %c0_29 = arith.constant 0 : index
    %c0_30 = arith.constant 0 : index
    %47 = vector.load %arg3[%c2_28, %c0_29, %c0_30] : memref<3x32x32xbf16, #tpu.memory_space<vmem>>, vector<1x32x32xbf16>
    %48 = vector.shape_cast %47 : vector<1x32x32xbf16> to vector<32x32xbf16>
    %cst_31 = arith.constant dense<0.000000e+00> : vector<32x256xf32>
    %49 = tpu.matmul %48, %40, %cst_31 {dimension_numbers = #tpu.dot_dimension_numbers<[1], [0], [0], [1], [0, 0, 1, 1], [], []>} : vector<32x32xbf16>, vector<32x256xbf16>, vector<32x256xf32> -> vector<32x256xf32>
    %c0_32 = arith.constant 0 : index
    %c0_33 = arith.constant 0 : index
    %50 = vector.load %arg10[%c0_32, %c0_33] : memref<32x1xf32, #tpu.memory_space<vmem>>, vector<32x1xf32>
    %51 = vector.broadcast %50 : vector<32x1xf32> to vector<32x256xf32>
    %52 = arith.addf %46, %51 : vector<32x256xf32>
    %c1_i32_34 = arith.constant 1 : i32
    %53 = tpu.dynamic_rotate %43 by %c1_i32_34 dim 1 : vector<32x256xf32>, i32 -> vector<32x256xf32>
    %cst_35 = arith.constant 0.000000e+00 : f32
    %54 = vector.shape_cast %3 : vector<1x256xi1> to vector<1x256xi1>
    %55 = vector.broadcast %54 : vector<1x256xi1> to vector<32x256xi1>
    %56 = vector.broadcast %cst_35 : f32 to vector<32x256xf32>
    %57 = arith.select %55, %56, %53 : vector<32x256xi1>, vector<32x256xf32>
    %58 = arith.addf %52, %57 : vector<32x256xf32>
    %c255_i32_36 = arith.constant 255 : i32
    %59 = tpu.dynamic_rotate %49 by %c255_i32_36 dim 1 : vector<32x256xf32>, i32 -> vector<32x256xf32>
    %cst_37 = arith.constant 0.000000e+00 : f32
    %60 = vector.shape_cast %5 : vector<1x256xi1> to vector<1x256xi1>
    %61 = vector.broadcast %60 : vector<1x256xi1> to vector<32x256xi1>
    %62 = vector.broadcast %cst_37 : f32 to vector<32x256xf32>
    %63 = arith.select %61, %62, %59 : vector<32x256xi1>, vector<32x256xf32>
    %64 = arith.addf %58, %63 : vector<32x256xf32>
    %65 = arith.extf %10 : vector<32x256xbf16> to vector<32x256xf32>
    %66 = arith.addf %64, %65 : vector<32x256xf32>
    %67 = arith.truncf %66 : vector<32x256xf32> to vector<32x256xbf16>
    %c0_38 = arith.constant 0 : index
    %c0_39 = arith.constant 0 : index
    %c0_40 = arith.constant 0 : index
    %68 = vector.load %arg4[%c0_38, %c0_39, %c0_40] : memref<3x32x32xbf16, #tpu.memory_space<vmem>>, vector<1x32x32xbf16>
    %69 = vector.shape_cast %68 : vector<1x32x32xbf16> to vector<32x32xbf16>
    %cst_41 = arith.constant dense<0.000000e+00> : vector<32x256xf32>
    %70 = tpu.matmul %69, %67, %cst_41 {dimension_numbers = #tpu.dot_dimension_numbers<[1], [0], [0], [1], [0, 0, 1, 1], [], []>} : vector<32x32xbf16>, vector<32x256xbf16>, vector<32x256xf32> -> vector<32x256xf32>
    %c1_42 = arith.constant 1 : index
    %c0_43 = arith.constant 0 : index
    %c0_44 = arith.constant 0 : index
    %71 = vector.load %arg4[%c1_42, %c0_43, %c0_44] : memref<3x32x32xbf16, #tpu.memory_space<vmem>>, vector<1x32x32xbf16>
    %72 = vector.shape_cast %71 : vector<1x32x32xbf16> to vector<32x32xbf16>
    %cst_45 = arith.constant dense<0.000000e+00> : vector<32x256xf32>
    %73 = tpu.matmul %72, %67, %cst_45 {dimension_numbers = #tpu.dot_dimension_numbers<[1], [0], [0], [1], [0, 0, 1, 1], [], []>} : vector<32x32xbf16>, vector<32x256xbf16>, vector<32x256xf32> -> vector<32x256xf32>
    %c2_46 = arith.constant 2 : index
    %c0_47 = arith.constant 0 : index
    %c0_48 = arith.constant 0 : index
    %74 = vector.load %arg4[%c2_46, %c0_47, %c0_48] : memref<3x32x32xbf16, #tpu.memory_space<vmem>>, vector<1x32x32xbf16>
    %75 = vector.shape_cast %74 : vector<1x32x32xbf16> to vector<32x32xbf16>
    %cst_49 = arith.constant dense<0.000000e+00> : vector<32x256xf32>
    %76 = tpu.matmul %75, %67, %cst_49 {dimension_numbers = #tpu.dot_dimension_numbers<[1], [0], [0], [1], [0, 0, 1, 1], [], []>} : vector<32x32xbf16>, vector<32x256xbf16>, vector<32x256xf32> -> vector<32x256xf32>
    %c0_50 = arith.constant 0 : index
    %c0_51 = arith.constant 0 : index
    %77 = vector.load %arg11[%c0_50, %c0_51] : memref<32x1xf32, #tpu.memory_space<vmem>>, vector<32x1xf32>
    %78 = vector.broadcast %77 : vector<32x1xf32> to vector<32x256xf32>
    %79 = arith.addf %73, %78 : vector<32x256xf32>
    %c1_i32_52 = arith.constant 1 : i32
    %80 = tpu.dynamic_rotate %70 by %c1_i32_52 dim 1 : vector<32x256xf32>, i32 -> vector<32x256xf32>
    %cst_53 = arith.constant 0.000000e+00 : f32
    %81 = vector.shape_cast %3 : vector<1x256xi1> to vector<1x256xi1>
    %82 = vector.broadcast %81 : vector<1x256xi1> to vector<32x256xi1>
    %83 = vector.broadcast %cst_53 : f32 to vector<32x256xf32>
    %84 = arith.select %82, %83, %80 : vector<32x256xi1>, vector<32x256xf32>
    %85 = arith.addf %79, %84 : vector<32x256xf32>
    %c255_i32_54 = arith.constant 255 : i32
    %86 = tpu.dynamic_rotate %76 by %c255_i32_54 dim 1 : vector<32x256xf32>, i32 -> vector<32x256xf32>
    %cst_55 = arith.constant 0.000000e+00 : f32
    %87 = vector.shape_cast %5 : vector<1x256xi1> to vector<1x256xi1>
    %88 = vector.broadcast %87 : vector<1x256xi1> to vector<32x256xi1>
    %89 = vector.broadcast %cst_55 : f32 to vector<32x256xf32>
    %90 = arith.select %88, %89, %86 : vector<32x256xi1>, vector<32x256xf32>
    %91 = arith.addf %85, %90 : vector<32x256xf32>
    %cst_56 = arith.constant 0.000000e+00 : f32
    %92 = vector.broadcast %cst_56 : f32 to vector<32x256xf32>
    %93 = arith.cmpf ogt, %91, %92 : vector<32x256xf32>
    %cst_57 = arith.constant 2.000000e-01 : f32
    %94 = vector.broadcast %cst_57 : f32 to vector<32x256xf32>
    %95 = arith.mulf %94, %91 : vector<32x256xf32>
    %96 = arith.select %93, %91, %95 : vector<32x256xi1>, vector<32x256xf32>
    %97 = arith.truncf %96 : vector<32x256xf32> to vector<32x256xbf16>
    %c0_58 = arith.constant 0 : index
    %c0_59 = arith.constant 0 : index
    %c0_60 = arith.constant 0 : index
    %98 = vector.load %arg5[%c0_58, %c0_59, %c0_60] : memref<3x32x32xbf16, #tpu.memory_space<vmem>>, vector<1x32x32xbf16>
    %99 = vector.shape_cast %98 : vector<1x32x32xbf16> to vector<32x32xbf16>
    %cst_61 = arith.constant dense<0.000000e+00> : vector<32x256xf32>
    %100 = tpu.matmul %99, %97, %cst_61 {dimension_numbers = #tpu.dot_dimension_numbers<[1], [0], [0], [1], [0, 0, 1, 1], [], []>} : vector<32x32xbf16>, vector<32x256xbf16>, vector<32x256xf32> -> vector<32x256xf32>
    %c1_62 = arith.constant 1 : index
    %c0_63 = arith.constant 0 : index
    %c0_64 = arith.constant 0 : index
    %101 = vector.load %arg5[%c1_62, %c0_63, %c0_64] : memref<3x32x32xbf16, #tpu.memory_space<vmem>>, vector<1x32x32xbf16>
    %102 = vector.shape_cast %101 : vector<1x32x32xbf16> to vector<32x32xbf16>
    %cst_65 = arith.constant dense<0.000000e+00> : vector<32x256xf32>
    %103 = tpu.matmul %102, %97, %cst_65 {dimension_numbers = #tpu.dot_dimension_numbers<[1], [0], [0], [1], [0, 0, 1, 1], [], []>} : vector<32x32xbf16>, vector<32x256xbf16>, vector<32x256xf32> -> vector<32x256xf32>
    %c2_66 = arith.constant 2 : index
    %c0_67 = arith.constant 0 : index
    %c0_68 = arith.constant 0 : index
    %104 = vector.load %arg5[%c2_66, %c0_67, %c0_68] : memref<3x32x32xbf16, #tpu.memory_space<vmem>>, vector<1x32x32xbf16>
    %105 = vector.shape_cast %104 : vector<1x32x32xbf16> to vector<32x32xbf16>
    %cst_69 = arith.constant dense<0.000000e+00> : vector<32x256xf32>
    %106 = tpu.matmul %105, %97, %cst_69 {dimension_numbers = #tpu.dot_dimension_numbers<[1], [0], [0], [1], [0, 0, 1, 1], [], []>} : vector<32x32xbf16>, vector<32x256xbf16>, vector<32x256xf32> -> vector<32x256xf32>
    %c0_70 = arith.constant 0 : index
    %c0_71 = arith.constant 0 : index
    %107 = vector.load %arg12[%c0_70, %c0_71] : memref<32x1xf32, #tpu.memory_space<vmem>>, vector<32x1xf32>
    %108 = vector.broadcast %107 : vector<32x1xf32> to vector<32x256xf32>
    %109 = arith.addf %103, %108 : vector<32x256xf32>
    %c1_i32_72 = arith.constant 1 : i32
    %110 = tpu.dynamic_rotate %100 by %c1_i32_72 dim 1 : vector<32x256xf32>, i32 -> vector<32x256xf32>
    %cst_73 = arith.constant 0.000000e+00 : f32
    %111 = vector.shape_cast %3 : vector<1x256xi1> to vector<1x256xi1>
    %112 = vector.broadcast %111 : vector<1x256xi1> to vector<32x256xi1>
    %113 = vector.broadcast %cst_73 : f32 to vector<32x256xf32>
    %114 = arith.select %112, %113, %110 : vector<32x256xi1>, vector<32x256xf32>
    %115 = arith.addf %109, %114 : vector<32x256xf32>
    %c255_i32_74 = arith.constant 255 : i32
    %116 = tpu.dynamic_rotate %106 by %c255_i32_74 dim 1 : vector<32x256xf32>, i32 -> vector<32x256xf32>
    %cst_75 = arith.constant 0.000000e+00 : f32
    %117 = vector.shape_cast %5 : vector<1x256xi1> to vector<1x256xi1>
    %118 = vector.broadcast %117 : vector<1x256xi1> to vector<32x256xi1>
    %119 = vector.broadcast %cst_75 : f32 to vector<32x256xf32>
    %120 = arith.select %118, %119, %116 : vector<32x256xi1>, vector<32x256xf32>
    %121 = arith.addf %115, %120 : vector<32x256xf32>
    %122 = arith.extf %67 : vector<32x256xbf16> to vector<32x256xf32>
    %123 = arith.addf %121, %122 : vector<32x256xf32>
    %124 = arith.truncf %123 : vector<32x256xf32> to vector<32x256xbf16>
    %c0_76 = arith.constant 0 : index
    %c0_77 = arith.constant 0 : index
    %c0_78 = arith.constant 0 : index
    %125 = vector.load %arg6[%c0_76, %c0_77, %c0_78] : memref<3x32x32xbf16, #tpu.memory_space<vmem>>, vector<1x32x32xbf16>
    %126 = vector.shape_cast %125 : vector<1x32x32xbf16> to vector<32x32xbf16>
    %cst_79 = arith.constant dense<0.000000e+00> : vector<32x256xf32>
    %127 = tpu.matmul %126, %124, %cst_79 {dimension_numbers = #tpu.dot_dimension_numbers<[1], [0], [0], [1], [0, 0, 1, 1], [], []>} : vector<32x32xbf16>, vector<32x256xbf16>, vector<32x256xf32> -> vector<32x256xf32>
    %c1_80 = arith.constant 1 : index
    %c0_81 = arith.constant 0 : index
    %c0_82 = arith.constant 0 : index
    %128 = vector.load %arg6[%c1_80, %c0_81, %c0_82] : memref<3x32x32xbf16, #tpu.memory_space<vmem>>, vector<1x32x32xbf16>
    %129 = vector.shape_cast %128 : vector<1x32x32xbf16> to vector<32x32xbf16>
    %cst_83 = arith.constant dense<0.000000e+00> : vector<32x256xf32>
    %130 = tpu.matmul %129, %124, %cst_83 {dimension_numbers = #tpu.dot_dimension_numbers<[1], [0], [0], [1], [0, 0, 1, 1], [], []>} : vector<32x32xbf16>, vector<32x256xbf16>, vector<32x256xf32> -> vector<32x256xf32>
    %c2_84 = arith.constant 2 : index
    %c0_85 = arith.constant 0 : index
    %c0_86 = arith.constant 0 : index
    %131 = vector.load %arg6[%c2_84, %c0_85, %c0_86] : memref<3x32x32xbf16, #tpu.memory_space<vmem>>, vector<1x32x32xbf16>
    %132 = vector.shape_cast %131 : vector<1x32x32xbf16> to vector<32x32xbf16>
    %cst_87 = arith.constant dense<0.000000e+00> : vector<32x256xf32>
    %133 = tpu.matmul %132, %124, %cst_87 {dimension_numbers = #tpu.dot_dimension_numbers<[1], [0], [0], [1], [0, 0, 1, 1], [], []>} : vector<32x32xbf16>, vector<32x256xbf16>, vector<32x256xf32> -> vector<32x256xf32>
    %c0_88 = arith.constant 0 : index
    %c0_89 = arith.constant 0 : index
    %134 = vector.load %arg13[%c0_88, %c0_89] : memref<32x1xf32, #tpu.memory_space<vmem>>, vector<32x1xf32>
    %135 = vector.broadcast %134 : vector<32x1xf32> to vector<32x256xf32>
    %136 = arith.addf %130, %135 : vector<32x256xf32>
    %c1_i32_90 = arith.constant 1 : i32
    %137 = tpu.dynamic_rotate %127 by %c1_i32_90 dim 1 : vector<32x256xf32>, i32 -> vector<32x256xf32>
    %cst_91 = arith.constant 0.000000e+00 : f32
    %138 = vector.shape_cast %3 : vector<1x256xi1> to vector<1x256xi1>
    %139 = vector.broadcast %138 : vector<1x256xi1> to vector<32x256xi1>
    %140 = vector.broadcast %cst_91 : f32 to vector<32x256xf32>
    %141 = arith.select %139, %140, %137 : vector<32x256xi1>, vector<32x256xf32>
    %142 = arith.addf %136, %141 : vector<32x256xf32>
    %c255_i32_92 = arith.constant 255 : i32
    %143 = tpu.dynamic_rotate %133 by %c255_i32_92 dim 1 : vector<32x256xf32>, i32 -> vector<32x256xf32>
    %cst_93 = arith.constant 0.000000e+00 : f32
    %144 = vector.shape_cast %5 : vector<1x256xi1> to vector<1x256xi1>
    %145 = vector.broadcast %144 : vector<1x256xi1> to vector<32x256xi1>
    %146 = vector.broadcast %cst_93 : f32 to vector<32x256xf32>
    %147 = arith.select %145, %146, %143 : vector<32x256xi1>, vector<32x256xf32>
    %148 = arith.addf %142, %147 : vector<32x256xf32>
    %cst_94 = arith.constant 0.000000e+00 : f32
    %149 = vector.broadcast %cst_94 : f32 to vector<32x256xf32>
    %150 = arith.cmpf ogt, %148, %149 : vector<32x256xf32>
    %cst_95 = arith.constant 2.000000e-01 : f32
    %151 = vector.broadcast %cst_95 : f32 to vector<32x256xf32>
    %152 = arith.mulf %151, %148 : vector<32x256xf32>
    %153 = arith.select %150, %148, %152 : vector<32x256xi1>, vector<32x256xf32>
    %154 = arith.truncf %153 : vector<32x256xf32> to vector<32x256xbf16>
    %c0_96 = arith.constant 0 : index
    %c0_97 = arith.constant 0 : index
    %c0_98 = arith.constant 0 : index
    %155 = vector.load %arg7[%c0_96, %c0_97, %c0_98] : memref<3x16x32xbf16, #tpu.memory_space<vmem>>, vector<1x16x32xbf16>
    %156 = vector.shape_cast %155 : vector<1x16x32xbf16> to vector<16x32xbf16>
    %cst_99 = arith.constant dense<0.000000e+00> : vector<16x256xf32>
    %157 = tpu.matmul %156, %154, %cst_99 {dimension_numbers = #tpu.dot_dimension_numbers<[1], [0], [0], [1], [0, 0, 1, 1], [], []>} : vector<16x32xbf16>, vector<32x256xbf16>, vector<16x256xf32> -> vector<16x256xf32>
    %c1_100 = arith.constant 1 : index
    %c0_101 = arith.constant 0 : index
    %c0_102 = arith.constant 0 : index
    %158 = vector.load %arg7[%c1_100, %c0_101, %c0_102] : memref<3x16x32xbf16, #tpu.memory_space<vmem>>, vector<1x16x32xbf16>
    %159 = vector.shape_cast %158 : vector<1x16x32xbf16> to vector<16x32xbf16>
    %cst_103 = arith.constant dense<0.000000e+00> : vector<16x256xf32>
    %160 = tpu.matmul %159, %154, %cst_103 {dimension_numbers = #tpu.dot_dimension_numbers<[1], [0], [0], [1], [0, 0, 1, 1], [], []>} : vector<16x32xbf16>, vector<32x256xbf16>, vector<16x256xf32> -> vector<16x256xf32>
    %c2_104 = arith.constant 2 : index
    %c0_105 = arith.constant 0 : index
    %c0_106 = arith.constant 0 : index
    %161 = vector.load %arg7[%c2_104, %c0_105, %c0_106] : memref<3x16x32xbf16, #tpu.memory_space<vmem>>, vector<1x16x32xbf16>
    %162 = vector.shape_cast %161 : vector<1x16x32xbf16> to vector<16x32xbf16>
    %cst_107 = arith.constant dense<0.000000e+00> : vector<16x256xf32>
    %163 = tpu.matmul %162, %154, %cst_107 {dimension_numbers = #tpu.dot_dimension_numbers<[1], [0], [0], [1], [0, 0, 1, 1], [], []>} : vector<16x32xbf16>, vector<32x256xbf16>, vector<16x256xf32> -> vector<16x256xf32>
    %c0_108 = arith.constant 0 : index
    %c0_109 = arith.constant 0 : index
    %164 = vector.load %arg14[%c0_108, %c0_109] : memref<16x1xf32, #tpu.memory_space<vmem>>, vector<16x1xf32>
    %165 = vector.broadcast %164 : vector<16x1xf32> to vector<16x256xf32>
    %166 = arith.addf %160, %165 : vector<16x256xf32>
    %c1_i32_110 = arith.constant 1 : i32
    %167 = tpu.dynamic_rotate %157 by %c1_i32_110 dim 1 : vector<16x256xf32>, i32 -> vector<16x256xf32>
    %cst_111 = arith.constant 0.000000e+00 : f32
    %168 = vector.shape_cast %3 : vector<1x256xi1> to vector<1x256xi1>
    %169 = vector.broadcast %168 : vector<1x256xi1> to vector<16x256xi1>
    %170 = vector.broadcast %cst_111 : f32 to vector<16x256xf32>
    %171 = arith.select %169, %170, %167 : vector<16x256xi1>, vector<16x256xf32>
    %172 = arith.addf %166, %171 : vector<16x256xf32>
    %c255_i32_112 = arith.constant 255 : i32
    %173 = tpu.dynamic_rotate %163 by %c255_i32_112 dim 1 : vector<16x256xf32>, i32 -> vector<16x256xf32>
    %cst_113 = arith.constant 0.000000e+00 : f32
    %174 = vector.shape_cast %5 : vector<1x256xi1> to vector<1x256xi1>
    %175 = vector.broadcast %174 : vector<1x256xi1> to vector<16x256xi1>
    %176 = vector.broadcast %cst_113 : f32 to vector<16x256xf32>
    %177 = arith.select %175, %176, %173 : vector<16x256xi1>, vector<16x256xf32>
    %178 = arith.addf %172, %177 : vector<16x256xf32>
    %cst_114 = arith.constant 0.000000e+00 : f32
    %179 = vector.broadcast %cst_114 : f32 to vector<16x256xf32>
    %180 = arith.cmpf ogt, %178, %179 : vector<16x256xf32>
    %cst_115 = arith.constant 2.000000e-01 : f32
    %181 = vector.broadcast %cst_115 : f32 to vector<16x256xf32>
    %182 = arith.mulf %181, %178 : vector<16x256xf32>
    %183 = arith.select %180, %178, %182 : vector<16x256xi1>, vector<16x256xf32>
    %184 = arith.truncf %183 : vector<16x256xf32> to vector<16x256xbf16>
    %c0_116 = arith.constant 0 : index
    %c0_117 = arith.constant 0 : index
    %c0_118 = arith.constant 0 : index
    %185 = vector.load %arg8[%c0_116, %c0_117, %c0_118] : memref<3x16x16xbf16, #tpu.memory_space<vmem>>, vector<1x16x16xbf16>
    %186 = vector.shape_cast %185 : vector<1x16x16xbf16> to vector<16x16xbf16>
    %cst_119 = arith.constant dense<0.000000e+00> : vector<16x256xf32>
    %187 = tpu.matmul %186, %184, %cst_119 {dimension_numbers = #tpu.dot_dimension_numbers<[1], [0], [0], [1], [0, 0, 1, 1], [], []>} : vector<16x16xbf16>, vector<16x256xbf16>, vector<16x256xf32> -> vector<16x256xf32>
    %c1_120 = arith.constant 1 : index
    %c0_121 = arith.constant 0 : index
    %c0_122 = arith.constant 0 : index
    %188 = vector.load %arg8[%c1_120, %c0_121, %c0_122] : memref<3x16x16xbf16, #tpu.memory_space<vmem>>, vector<1x16x16xbf16>
    %189 = vector.shape_cast %188 : vector<1x16x16xbf16> to vector<16x16xbf16>
    %cst_123 = arith.constant dense<0.000000e+00> : vector<16x256xf32>
    %190 = tpu.matmul %189, %184, %cst_123 {dimension_numbers = #tpu.dot_dimension_numbers<[1], [0], [0], [1], [0, 0, 1, 1], [], []>} : vector<16x16xbf16>, vector<16x256xbf16>, vector<16x256xf32> -> vector<16x256xf32>
    %c2_124 = arith.constant 2 : index
    %c0_125 = arith.constant 0 : index
    %c0_126 = arith.constant 0 : index
    %191 = vector.load %arg8[%c2_124, %c0_125, %c0_126] : memref<3x16x16xbf16, #tpu.memory_space<vmem>>, vector<1x16x16xbf16>
    %192 = vector.shape_cast %191 : vector<1x16x16xbf16> to vector<16x16xbf16>
    %cst_127 = arith.constant dense<0.000000e+00> : vector<16x256xf32>
    %193 = tpu.matmul %192, %184, %cst_127 {dimension_numbers = #tpu.dot_dimension_numbers<[1], [0], [0], [1], [0, 0, 1, 1], [], []>} : vector<16x16xbf16>, vector<16x256xbf16>, vector<16x256xf32> -> vector<16x256xf32>
    %c0_128 = arith.constant 0 : index
    %c0_129 = arith.constant 0 : index
    %194 = vector.load %arg15[%c0_128, %c0_129] : memref<16x1xf32, #tpu.memory_space<vmem>>, vector<16x1xf32>
    %195 = vector.broadcast %194 : vector<16x1xf32> to vector<16x256xf32>
    %196 = arith.addf %190, %195 : vector<16x256xf32>
    %c1_i32_130 = arith.constant 1 : i32
    %197 = tpu.dynamic_rotate %187 by %c1_i32_130 dim 1 : vector<16x256xf32>, i32 -> vector<16x256xf32>
    %cst_131 = arith.constant 0.000000e+00 : f32
    %198 = vector.shape_cast %3 : vector<1x256xi1> to vector<1x256xi1>
    %199 = vector.broadcast %198 : vector<1x256xi1> to vector<16x256xi1>
    %200 = vector.broadcast %cst_131 : f32 to vector<16x256xf32>
    %201 = arith.select %199, %200, %197 : vector<16x256xi1>, vector<16x256xf32>
    %202 = arith.addf %196, %201 : vector<16x256xf32>
    %c255_i32_132 = arith.constant 255 : i32
    %203 = tpu.dynamic_rotate %193 by %c255_i32_132 dim 1 : vector<16x256xf32>, i32 -> vector<16x256xf32>
    %cst_133 = arith.constant 0.000000e+00 : f32
    %204 = vector.shape_cast %5 : vector<1x256xi1> to vector<1x256xi1>
    %205 = vector.broadcast %204 : vector<1x256xi1> to vector<16x256xi1>
    %206 = vector.broadcast %cst_133 : f32 to vector<16x256xf32>
    %207 = arith.select %205, %206, %203 : vector<16x256xi1>, vector<16x256xf32>
    %208 = arith.addf %202, %207 : vector<16x256xf32>
    %209 = vector.extract_strided_slice %208 {offsets = [0, 0], sizes = [16, 8], strides = [1, 1]} : vector<16x256xf32> to vector<16x8xf32>
    %c0_134 = arith.constant 0 : index
    %c0_135 = arith.constant 0 : index
    %c0_136 = arith.constant 0 : index
    %210 = vector.load %arg16[%c0_134, %c0_135, %c0_136] : memref<2x16x8xf32, #tpu.memory_space<vmem>>, vector<1x16x8xf32>
    %211 = vector.shape_cast %210 : vector<1x16x8xf32> to vector<16x8xf32>
    %212 = vector.shape_cast %209 : vector<16x8xf32> to vector<1x16x8xf32>
    tpu.vector_store %arg16[%c0_134, %c0_135, %c0_136], %212 {strides = array<i32>} : memref<2x16x8xf32, #tpu.memory_space<vmem>>, vector<1x16x8xf32>,
    %213 = vector.extract_strided_slice %208 {offsets = [0, 128], sizes = [16, 8], strides = [1, 1]} : vector<16x256xf32> to vector<16x8xf32>
    %c1_137 = arith.constant 1 : index
    %c0_138 = arith.constant 0 : index
    %c0_139 = arith.constant 0 : index
    %214 = vector.load %arg16[%c1_137, %c0_138, %c0_139] : memref<2x16x8xf32, #tpu.memory_space<vmem>>, vector<1x16x8xf32>
    %215 = vector.shape_cast %214 : vector<1x16x8xf32> to vector<16x8xf32>
    %216 = vector.shape_cast %213 : vector<16x8xf32> to vector<1x16x8xf32>
    tpu.vector_store %arg16[%c1_137, %c0_138, %c0_139], %216 {strides = array<i32>} : memref<2x16x8xf32, #tpu.memory_space<vmem>>, vector<1x16x8xf32>,
    return
  }
  func.func @transform_0(%arg0: i32) -> (i32, i32, i32) {
    %c0_i32 = arith.constant 0 : i32
    %c0_i32_0 = arith.constant 0 : i32
    %c0_i32_1 = arith.constant 0 : i32
    return %arg0, %c0_i32, %c0_i32_0 : i32, i32, i32
  }
  func.func @transform_1(%arg0: i32) -> (i32, i32, i32) {
    %c0_i32 = arith.constant 0 : i32
    %c0_i32_0 = arith.constant 0 : i32
    %c0_i32_1 = arith.constant 0 : i32
    %c0_i32_2 = arith.constant 0 : i32
    return %c0_i32, %c0_i32_0, %c0_i32_1 : i32, i32, i32
  }
  func.func @transform_2(%arg0: i32) -> (i32, i32, i32) {
    %c0_i32 = arith.constant 0 : i32
    %c0_i32_0 = arith.constant 0 : i32
    %c0_i32_1 = arith.constant 0 : i32
    %c0_i32_2 = arith.constant 0 : i32
    return %c0_i32, %c0_i32_0, %c0_i32_1 : i32, i32, i32
  }
  func.func @transform_3(%arg0: i32) -> (i32, i32, i32) {
    %c0_i32 = arith.constant 0 : i32
    %c0_i32_0 = arith.constant 0 : i32
    %c0_i32_1 = arith.constant 0 : i32
    %c0_i32_2 = arith.constant 0 : i32
    return %c0_i32, %c0_i32_0, %c0_i32_1 : i32, i32, i32
  }
  func.func @transform_4(%arg0: i32) -> (i32, i32, i32) {
    %c0_i32 = arith.constant 0 : i32
    %c0_i32_0 = arith.constant 0 : i32
    %c0_i32_1 = arith.constant 0 : i32
    %c0_i32_2 = arith.constant 0 : i32
    return %c0_i32, %c0_i32_0, %c0_i32_1 : i32, i32, i32
  }
  func.func @transform_5(%arg0: i32) -> (i32, i32, i32) {
    %c0_i32 = arith.constant 0 : i32
    %c0_i32_0 = arith.constant 0 : i32
    %c0_i32_1 = arith.constant 0 : i32
    %c0_i32_2 = arith.constant 0 : i32
    return %c0_i32, %c0_i32_0, %c0_i32_1 : i32, i32, i32
  }
  func.func @transform_6(%arg0: i32) -> (i32, i32, i32) {
    %c0_i32 = arith.constant 0 : i32
    %c0_i32_0 = arith.constant 0 : i32
    %c0_i32_1 = arith.constant 0 : i32
    %c0_i32_2 = arith.constant 0 : i32
    return %c0_i32, %c0_i32_0, %c0_i32_1 : i32, i32, i32
  }
  func.func @transform_7(%arg0: i32) -> (i32, i32, i32) {
    %c0_i32 = arith.constant 0 : i32
    %c0_i32_0 = arith.constant 0 : i32
    %c0_i32_1 = arith.constant 0 : i32
    %c0_i32_2 = arith.constant 0 : i32
    return %c0_i32, %c0_i32_0, %c0_i32_1 : i32, i32, i32
  }
  func.func @transform_8(%arg0: i32) -> (i32, i32) {
    %c0_i32 = arith.constant 0 : i32
    %c0_i32_0 = arith.constant 0 : i32
    %c0_i32_1 = arith.constant 0 : i32
    return %c0_i32, %c0_i32_0 : i32, i32
  }
  func.func @transform_9(%arg0: i32) -> (i32, i32) {
    %c0_i32 = arith.constant 0 : i32
    %c0_i32_0 = arith.constant 0 : i32
    %c0_i32_1 = arith.constant 0 : i32
    return %c0_i32, %c0_i32_0 : i32, i32
  }
  func.func @transform_10(%arg0: i32) -> (i32, i32) {
    %c0_i32 = arith.constant 0 : i32
    %c0_i32_0 = arith.constant 0 : i32
    %c0_i32_1 = arith.constant 0 : i32
    return %c0_i32, %c0_i32_0 : i32, i32
  }
  func.func @transform_11(%arg0: i32) -> (i32, i32) {
    %c0_i32 = arith.constant 0 : i32
    %c0_i32_0 = arith.constant 0 : i32
    %c0_i32_1 = arith.constant 0 : i32
    return %c0_i32, %c0_i32_0 : i32, i32
  }
  func.func @transform_12(%arg0: i32) -> (i32, i32) {
    %c0_i32 = arith.constant 0 : i32
    %c0_i32_0 = arith.constant 0 : i32
    %c0_i32_1 = arith.constant 0 : i32
    return %c0_i32, %c0_i32_0 : i32, i32
  }
  func.func @transform_13(%arg0: i32) -> (i32, i32) {
    %c0_i32 = arith.constant 0 : i32
    %c0_i32_0 = arith.constant 0 : i32
    %c0_i32_1 = arith.constant 0 : i32
    return %c0_i32, %c0_i32_0 : i32, i32
  }
  func.func @transform_14(%arg0: i32) -> (i32, i32) {
    %c0_i32 = arith.constant 0 : i32
    %c0_i32_0 = arith.constant 0 : i32
    %c0_i32_1 = arith.constant 0 : i32
    return %c0_i32, %c0_i32_0 : i32, i32
  }
  func.func @transform_15(%arg0: i32) -> (i32, i32, i32) {
    %c0_i32 = arith.constant 0 : i32
    %c0_i32_0 = arith.constant 0 : i32
    %c0_i32_1 = arith.constant 0 : i32
    return %arg0, %c0_i32, %c0_i32_0 : i32, i32, i32
  }
}

</mosaic_0001>

<llo_original>
// kernel: _lambda_.1
$region0: #{_lambda_.1}
  #allocation0 [shape = 'u32[]', space=smem, size = 0x4, offset = 0x4, fixed_abs, tag = 'smem constant byte address 0x4 - core index']
  #allocation1 [shape = 'u32[144,128]{1,0:T(1,128)}', space=vmem, size = 0x12000, scoped, tag = 'internal scratch']
  %s0 = inlined_call_operand.vmem [shape: bf16[2,32,128], index: 0, kind: input, shape index: {}]
  %s1 = inlined_call_operand.hbm [shape: bf16[3,32,32], index: 1, kind: input, shape index: {}]
  %s2 = inlined_call_operand.vmem [shape: bf16[3,32,32], index: 2, kind: input, shape index: {}]
  %s3 = inlined_call_operand.vmem [shape: bf16[3,32,32], index: 3, kind: input, shape index: {}]
  %s4 = inlined_call_operand.vmem [shape: bf16[3,32,32], index: 4, kind: input, shape index: {}]
  %s5 = inlined_call_operand.vmem [shape: bf16[3,32,32], index: 5, kind: input, shape index: {}]
  %s6 = inlined_call_operand.hbm [shape: bf16[3,16,32], index: 6, kind: input, shape index: {}]
  %s7 = inlined_call_operand.vmem [shape: bf16[3,16,16], index: 7, kind: input, shape index: {}]
  %s8 = inlined_call_operand.vmem [shape: f32[32,1], index: 8, kind: input, shape index: {}, may-alias: {8,9,10,11,12}]
  %s9 = inlined_call_operand.vmem [shape: f32[32,1], index: 9, kind: input, shape index: {}, may-alias: {8,9,10,11,12}]
  %s10 = inlined_call_operand.vmem [shape: f32[32,1], index: 10, kind: input, shape index: {}, may-alias: {8,9,10,11,12}]
  %s11 = inlined_call_operand.vmem [shape: f32[32,1], index: 11, kind: input, shape index: {}, may-alias: {8,9,10,11,12}]
  %s12 = inlined_call_operand.vmem [shape: f32[32,1], index: 12, kind: input, shape index: {}, may-alias: {8,9,10,11,12}]
  %s13 = inlined_call_operand.vmem [shape: f32[16,1], index: 13, kind: input, shape index: {}, may-alias: {13,14}]
  %s14 = inlined_call_operand.vmem [shape: f32[16,1], index: 14, kind: input, shape index: {}, may-alias: {13,14}]
  %s15 = inlined_call_operand.vmem [shape: f32[2,16,8], index: 15, kind: output, shape index: {}]
  %s16 = sld [smem:[#allocation0]]
  $region78: #{_lambda_.1} parent=0
    _
  %s18 = ssub.s32 1, %s16
  %s19 = scalar_select 0, %s18, %s16
  $region1: #{_lambda_.1} parent=0
    #allocation2 [shape = 'u8[24576]{0}', space=vmem, size = 0x6000, scoped, tag = 'input window, operand 1, single buffered']
    #allocation3 [shape = 's32[1]{0}', space=sflag, size = 0x4, scoped, tag = 'scoped memory for _lambda_.1']
    #allocation4 [shape = 'u8[12288]{0}', space=vmem, size = 0x3000, scoped, tag = 'input window, operand 6, single buffered']
    #allocation5 [shape = 's32[1]{0}', space=sflag, size = 0x4, scoped, tag = 'scoped memory for _lambda_.1']
    %20 = vsyncpa [#allocation3], 0
    %21 = vsyncpa [#allocation5], 0
    // Predicated region
    $region2: #{_lambda_.1} parent=1 // pred_check
      _
    $region3: #{_lambda_.1} parent=1 // pred_check_branch
      %23 = sbr.rel (0) target = $region5
    $region4: #{_lambda_.1} parent=1 // pred_region
      _
    $region5: #{_lambda_.1} parent=1 // pred_fallthru
      _
    // Predicated region
    $region6: #{_lambda_.1} parent=1 // pred_check
      _
    $region7: #{_lambda_.1} parent=1 // pred_check_branch
      %25 = sbr.rel (0) target = $region9
    $region8: #{_lambda_.1} parent=1 // pred_region
      %s27 = ssub.s32 768, 768
      %28 = vsyncadd [#allocation3], %s27
      %s29 = sshll.u32 [#allocation2], 4
      %s30 = int_to_ptr.vmem [resolvable:$true] %s29
      %35 = dma.hbm_to_vmem [thread:$0]  %s1, 768, %s30, [#allocation3], 64, 64, 4
    $region9: #{_lambda_.1} parent=1 // pred_fallthru
      _
    // Predicated region
    $region10: #{_lambda_.1} parent=1 // pred_check
      _
    $region11: #{_lambda_.1} parent=1 // pred_check_branch
      %37 = sbr.rel (0) target = $region13
    $region12: #{_lambda_.1} parent=1 // pred_region
      _
    $region13: #{_lambda_.1} parent=1 // pred_fallthru
      _
    // Predicated region
    $region14: #{_lambda_.1} parent=1 // pred_check
      _
    $region15: #{_lambda_.1} parent=1 // pred_check_branch
      %39 = sbr.rel (0) target = $region17
    $region16: #{_lambda_.1} parent=1 // pred_region
      _
    $region17: #{_lambda_.1} parent=1 // pred_fallthru
      _
    // Predicated region
    $region18: #{_lambda_.1} parent=1 // pred_check
      _
    $region19: #{_lambda_.1} parent=1 // pred_check_branch
      %41 = sbr.rel (0) target = $region21
    $region20: #{_lambda_.1} parent=1 // pred_region
      _
    $region21: #{_lambda_.1} parent=1 // pred_fallthru
      _
    // Predicated region
    $region22: #{_lambda_.1} parent=1 // pred_check
      _
    $region23: #{_lambda_.1} parent=1 // pred_check_branch
      %43 = sbr.rel (0) target = $region25
    $region24: #{_lambda_.1} parent=1 // pred_region
      _
    $region25: #{_lambda_.1} parent=1 // pred_fallthru
      _
    // Predicated region
    $region26: #{_lambda_.1} parent=1 // pred_check
      _
    $region27: #{_lambda_.1} parent=1 // pred_check_branch
      %45 = sbr.rel (0) target = $region29
    $region28: #{_lambda_.1} parent=1 // pred_region
      %s47 = ssub.s32 384, 384
      %48 = vsyncadd [#allocation5], %s47
      %s49 = sshll.u32 [#allocation4], 4
      %s50 = int_to_ptr.vmem [resolvable:$true] %s49
      %55 = dma.hbm_to_vmem [thread:$0]  %s6, 384, %s50, [#allocation5], 64, 64, 4
    $region29: #{_lambda_.1} parent=1 // pred_fallthru
      _
    // Predicated region
    $region30: #{_lambda_.1} parent=1 // pred_check
      _
    $region31: #{_lambda_.1} parent=1 // pred_check_branch
      %57 = sbr.rel (0) target = $region33
    $region32: #{_lambda_.1} parent=1 // pred_region
      _
    $region33: #{_lambda_.1} parent=1 // pred_fallthru
      _
    // Predicated region
    $region34: #{_lambda_.1} parent=1 // pred_check
      _
    $region35: #{_lambda_.1} parent=1 // pred_check_branch
      %59 = sbr.rel (0) target = $region37
    $region36: #{_lambda_.1} parent=1 // pred_region
      _
    $region37: #{_lambda_.1} parent=1 // pred_fallthru
      _
    // Predicated region
    $region38: #{_lambda_.1} parent=1 // pred_check
      _
    $region39: #{_lambda_.1} parent=1 // pred_check_branch
      %61 = sbr.rel (0) target = $region41
    $region40: #{_lambda_.1} parent=1 // pred_region
      _
    $region41: #{_lambda_.1} parent=1 // pred_fallthru
      _
    // Predicated region
    $region42: #{_lambda_.1} parent=1 // pred_check
      _
    $region43: #{_lambda_.1} parent=1 // pred_check_branch
      %63 = sbr.rel (0) target = $region45
    $region44: #{_lambda_.1} parent=1 // pred_region
      _
    $region45: #{_lambda_.1} parent=1 // pred_fallthru
      _
    // Predicated region
    $region46: #{_lambda_.1} parent=1 // pred_check
      _
    $region47: #{_lambda_.1} parent=1 // pred_check_branch
      %65 = sbr.rel (0) target = $region49
    $region48: #{_lambda_.1} parent=1 // pred_region
      _
    $region49: #{_lambda_.1} parent=1 // pred_fallthru
      _
    // Predicated region
    $region50: #{_lambda_.1} parent=1 // pred_check
      _
    $region51: #{_lambda_.1} parent=1 // pred_check_branch
      %67 = sbr.rel (0) target = $region53
    $region52: #{_lambda_.1} parent=1 // pred_region
      _
    $region53: #{_lambda_.1} parent=1 // pred_fallthru
      _
    // Predicated region
    $region54: #{_lambda_.1} parent=1 // pred_check
      _
    $region55: #{_lambda_.1} parent=1 // pred_check_branch
      %69 = sbr.rel (0) target = $region57
    $region56: #{_lambda_.1} parent=1 // pred_region
      _
    $region57: #{_lambda_.1} parent=1 // pred_fallthru
      _
    // Predicated region
    $region58: #{_lambda_.1} parent=1 // pred_check
      _
    $region59: #{_lambda_.1} parent=1 // pred_check_branch
      %71 = sbr.rel (0) target = $region61
    $region60: #{_lambda_.1} parent=1 // pred_region
      _
    $region61: #{_lambda_.1} parent=1 // pred_fallthru
      _
    // Predicated region
    $region62: #{_lambda_.1} parent=1 // pred_check
      _
    $region63: #{_lambda_.1} parent=1 // pred_check_branch
      %73 = sbr.rel (0) target = $region65
    $region64: #{_lambda_.1} parent=1 // pred_region
      %74 = dma.done [#allocation3], 768
    $region65: #{_lambda_.1} parent=1 // pred_fallthru
      _
    // Predicated region
    $region66: #{_lambda_.1} parent=1 // pred_check
      _
    $region67: #{_lambda_.1} parent=1 // pred_check_branch
      %76 = sbr.rel (0) target = $region69
    $region68: #{_lambda_.1} parent=1 // pred_region
      %77 = dma.done [#allocation5], 384
    $region69: #{_lambda_.1} parent=1 // pred_fallthru
      _
    %v79 = vlaneseq
    %v80 = vand.u32 %v79, 127
    %vm81 = vcmp.eq.s32.totalorder %v80, 0
    %vm82 = vcmp.ge.s32.totalorder %v80, 7
    %v83 = vld [vmem:[%s0] sm:$0xf]
    %v84 = vld [vmem:[%s0 + $0x4] sm:$0xf]
    %v85 = vld [vmem:[%s0 + $0x8] sm:$0xf]
    %v86 = vld [vmem:[%s0 + $0xc] sm:$0xf]
    %s87 = scalar_lea.vmem %s0, 16
    %v88 = vld [vmem:[%s87] sm:$0xf]
    %v89 = vld [vmem:[%s87 + $0x4] sm:$0xf]
    %v90 = vld [vmem:[%s87 + $0x8] sm:$0xf]
    %v91 = vld [vmem:[%s87 + $0xc] sm:$0xf]
    %v96 = vunpack.c.l.b16 %v83
    %v97 = vunpack.c.l.b16 %v84
    %v98 = vunpack.c.l.b16 %v85
    %v99 = vunpack.c.l.b16 %v86
    %v100 = vpack.c.b16 %v97, %v96
    %v101 = vpack.c.b16 %v99, %v98
    %v108 = vunpack.c.l.b16 %v88
    %v109 = vunpack.c.l.b16 %v89
    %v110 = vunpack.c.l.b16 %v90
    %v111 = vunpack.c.l.b16 %v91
    %v112 = vpack.c.b16 %v109, %v108
    %v113 = vpack.c.b16 %v111, %v110
    %v116 = vld [vmem:[#allocation2] sm:$0xf]
    %v117 = vld [vmem:[#allocation2 + $0x4] sm:$0xf]
    %v118 = vld [vmem:[#allocation2 + $0x8] sm:$0xf]
    %v119 = vld [vmem:[#allocation2 + $0xc] sm:$0xf]
    %v124 = vunpack.c.l.b16 %v116
    %v125 = vunpack.c.l.b16 %v117
    %v126 = vunpack.c.l.b16 %v118
    %v127 = vunpack.c.l.b16 %v119
    %v128 = vpack.c.b16 %v125, %v124
    %v129 = vpack.c.b16 %v127, %v126
    %vm130 = vcmask 261120
    %v132 = vsel %vm130, %v128, 0
    %v135 = vsel %vm130, %v129, 0
    %137 = vmatprep.subr.bf16.mxu0 %v112
    %138 = vmatpush1.bf16.msra.mxu0 %v100
    %139 = vmatprep.subr.bf16.mxu0 %v113
    %140 = vmatpush1.bf16.msra.mxu0 %v101
    %141 = vmatprep.subr.bf16.mxu0 0
    %142 = vmatpush1.bf16.msra.mxu0 0
    %143 = vmatprep.subr.bf16.mxu0 0
    %144 = vmatpush1.bf16.msra.mxu0 0
    %145 = vmatprep.subr.bf16.mxu0 0
    %146 = vmatpush1.bf16.msra.mxu0 0
    %147 = vmatprep.subr.bf16.mxu0 0
    %148 = vmatpush1.bf16.msra.mxu0 0
    %149 = vmatprep.subr.bf16.mxu0 0
    %150 = vmatpush1.bf16.msra.mxu0 0
    %151 = vmatprep.subr.bf16.mxu0 0
    %152 = vmatpush1.bf16.msra.mxu0 0
    %153 = vmatprep.subr.bf16.mxu0 0
    %154 = vmatpush1.bf16.msra.mxu0 0
    %155 = vmatprep.subr.bf16.mxu0 0
    %156 = vmatpush1.bf16.msra.mxu0 0
    %157 = vmatprep.subr.bf16.mxu0 0
    %158 = vmatpush1.bf16.msra.mxu0 0
    %159 = vmatprep.subr.bf16.mxu0 0
    %160 = vmatpush1.bf16.msra.mxu0 0
    %161 = vmatprep.subr.bf16.mxu0 0
    %162 = vmatpush1.bf16.msra.mxu0 0
    %163 = vmatprep.subr.bf16.mxu0 0
    %164 = vmatpush1.bf16.msra.mxu0 0
    %165 = vmatprep.subr.bf16.mxu0 0
    %166 = vmatpush1.bf16.msra.mxu0 0
    %167 = vmatprep.subr.bf16.mxu0 0
    %168 = vmatpush1.bf16.msra.mxu0 0
    %169 = vmatprep.mubr.bf16.mxu0 0
    %170 = vmatmul.mubr.bf16.gmra.mrb[0].mxu0 %v132
    %v171 = vpop.f32.mrb[0].mxu0
    %v172 = vadd.f32 0.0, %v171
    %v173 = vpop.f32.mrb[0].mxu0
    %v174 = vadd.f32 0.0, %v173
    %v175 = vpop.f32.mrb[0].mxu0
    %v176 = vadd.f32 0.0, %v175
    %v177 = vpop.f32.mrb[0].mxu0
    %v178 = vadd.f32 0.0, %v177
    %179 = vmatprep.mubr.bf16.mxu0 0
    %180 = vmatmul.mubr.bf16.gmra.mrb[0].mxu0 %v135
    %v181 = vpop.f32.mrb[0].mxu0
    %v182 = vadd.f32 0.0, %v181
    %v183 = vpop.f32.mrb[0].mxu0
    %v184 = vadd.f32 0.0, %v183
    %v185 = vpop.f32.mrb[0].mxu0
    %v186 = vadd.f32 0.0, %v185
    %v187 = vpop.f32.mrb[0].mxu0
    %v188 = vadd.f32 0.0, %v187
    %189 = vdwg.mxu0
    %s190 = scalar_lea.vmem [#allocation2], 16
    %v191 = vld [vmem:[%s190] sm:$0xf]
    %v192 = vld [vmem:[%s190 + $0x4] sm:$0xf]
    %v193 = vld [vmem:[%s190 + $0x8] sm:$0xf]
    %v194 = vld [vmem:[%s190 + $0xc] sm:$0xf]
    %s195 = scalar_lea.vmem [#allocation2], 32
    %v196 = vld [vmem:[%s195] sm:$0xf]
    %v197 = vld [vmem:[%s195 + $0x4] sm:$0xf]
    %v198 = vld [vmem:[%s195 + $0x8] sm:$0xf]
    %v199 = vld [vmem:[%s195 + $0xc] sm:$0xf]
    %v204 = vunpack.c.l.b16 %v196
    %v205 = vunpack.c.l.b16 %v197
    %v206 = vunpack.c.l.b16 %v198
    %v207 = vunpack.c.l.b16 %v199
    %v208 = vpack.c.b16 %v205, %v204
    %v209 = vpack.c.b16 %v207, %v206
    %v211 = vsel %vm130, %v208, 0
    %v214 = vsel %vm130, %v209, 0
    %216 = vmatprep.subr.bf16.mxu0 %v112
    %217 = vmatpush1.bf16.msra.mxu0 %v100
    %218 = vmatprep.subr.bf16.mxu0 %v113
    %219 = vmatpush1.bf16.msra.mxu0 %v101
    %220 = vmatprep.subr.bf16.mxu0 0
    %221 = vmatpush1.bf16.msra.mxu0 0
    %222 = vmatprep.subr.bf16.mxu0 0
    %223 = vmatpush1.bf16.msra.mxu0 0
    %224 = vmatprep.subr.bf16.mxu0 0
    %225 = vmatpush1.bf16.msra.mxu0 0
    %226 = vmatprep.subr.bf16.mxu0 0
    %227 = vmatpush1.bf16.msra.mxu0 0
    %228 = vmatprep.subr.bf16.mxu0 0
    %229 = vmatpush1.bf16.msra.mxu0 0
    %230 = vmatprep.subr.bf16.mxu0 0
    %231 = vmatpush1.bf16.msra.mxu0 0
    %232 = vmatprep.subr.bf16.mxu0 0
    %233 = vmatpush1.bf16.msra.mxu0 0
    %234 = vmatprep.subr.bf16.mxu0 0
    %235 = vmatpush1.bf16.msra.mxu0 0
    %236 = vmatprep.subr.bf16.mxu0 0
    %237 = vmatpush1.bf16.msra.mxu0 0
    %238 = vmatprep.subr.bf16.mxu0 0
    %239 = vmatpush1.bf16.msra.mxu0 0
    %240 = vmatprep.subr.bf16.mxu0 0
    %241 = vmatpush1.bf16.msra.mxu0 0
    %242 = vmatprep.subr.bf16.mxu0 0
    %243 = vmatpush1.bf16.msra.mxu0 0
    %244 = vmatprep.subr.bf16.mxu0 0
    %245 = vmatpush1.bf16.msra.mxu0 0
    %246 = vmatprep.subr.bf16.mxu0 0
    %247 = vmatpush1.bf16.msra.mxu0 0
    %248 = vmatprep.mubr.bf16.mxu0 0
    %249 = vmatmul.mubr.bf16.gmra.mrb[0].mxu0 %v211
    %v250 = vpop.f32.mrb[0].mxu0
    %v251 = vadd.f32 0.0, %v250
    %v252 = vpop.f32.mrb[0].mxu0
    %v253 = vadd.f32 0.0, %v252
    %v254 = vpop.f32.mrb[0].mxu0
    %v255 = vadd.f32 0.0, %v254
    %v256 = vpop.f32.mrb[0].mxu0
    %v257 = vadd.f32 0.0, %v256
    %258 = vmatprep.mubr.bf16.mxu0 0
    %259 = vmatmul.mubr.bf16.gmra.mrb[0].mxu0 %v214
    %v260 = vpop.f32.mrb[0].mxu0
    %v261 = vadd.f32 0.0, %v260
    %v262 = vpop.f32.mrb[0].mxu0
    %v263 = vadd.f32 0.0, %v262
    %v264 = vpop.f32.mrb[0].mxu0
    %v265 = vadd.f32 0.0, %v264
    %v266 = vpop.f32.mrb[0].mxu0
    %v267 = vadd.f32 0.0, %v266
    %268 = vdwg.mxu0
    %v269 = vld [vmem:[%s8] sm:$0xff]
    %v270 = vld [vmem:[%s8 + $0x8] sm:$0xff]
    %v271 = vld [vmem:[%s8 + $0x10] sm:$0xff]
    %v272 = vld [vmem:[%s8 + $0x18] sm:$0xff]
    %274 = vset.pattern.permute.xlu0 0
    %275 = vperm.xlu0 %274, %v269
    %v276 = vpop.permute.xlu0 %275
    %279 = vset.pattern.permute.xlu0 0
    %280 = vperm.xlu0 %279, %v270
    %v281 = vpop.permute.xlu0 %280
    %284 = vset.pattern.permute.xlu0 0
    %285 = vperm.xlu0 %284, %v271
    %v286 = vpop.permute.xlu0 %285
    %289 = vset.pattern.permute.xlu0 0
    %290 = vperm.xlu0 %289, %v272
    %v291 = vpop.permute.xlu0 %290
    %v297 = vunpack.c.l.b16 %v191
    %v298 = vunpack.c.l.b16 %v192
    %v299 = vunpack.c.l.b16 %v193
    %v300 = vunpack.c.l.b16 %v194
    %v301 = vpack.c.b16 %v298, %v297
    %v302 = vpack.c.b16 %v300, %v299
    %v304 = vsel %vm130, %v301, 0
    %v307 = vsel %vm130, %v302, 0
    %309 = vmatprep.subr.bf16.mxu0 %v112
    %310 = vmatpush1.bf16.msra.mxu0 %v100
    %311 = vmatprep.subr.bf16.mxu0 %v113
    %312 = vmatpush1.bf16.msra.mxu0 %v101
    %313 = vmatprep.subr.bf16.mxu0 0
    %314 = vmatpush1.bf16.msra.mxu0 0
    %315 = vmatprep.subr.bf16.mxu0 0
    %316 = vmatpush1.bf16.msra.mxu0 0
    %317 = vmatprep.subr.bf16.mxu0 0
    %318 = vmatpush1.bf16.msra.mxu0 0
    %319 = vmatprep.subr.bf16.mxu0 0
    %320 = vmatpush1.bf16.msra.mxu0 0
    %321 = vmatprep.subr.bf16.mxu0 0
    %322 = vmatpush1.bf16.msra.mxu0 0
    %323 = vmatprep.subr.bf16.mxu0 0
    %324 = vmatpush1.bf16.msra.mxu0 0
    %325 = vmatprep.subr.bf16.mxu0 0
    %326 = vmatpush1.bf16.msra.mxu0 0
    %327 = vmatprep.subr.bf16.mxu0 0
    %328 = vmatpush1.bf16.msra.mxu0 0
    %329 = vmatprep.subr.bf16.mxu0 0
    %330 = vmatpush1.bf16.msra.mxu0 0
    %331 = vmatprep.subr.bf16.mxu0 0
    %332 = vmatpush1.bf16.msra.mxu0 0
    %333 = vmatprep.subr.bf16.mxu0 0
    %334 = vmatpush1.bf16.msra.mxu0 0
    %335 = vmatprep.subr.bf16.mxu0 0
    %336 = vmatpush1.bf16.msra.mxu0 0
    %337 = vmatprep.subr.bf16.mxu0 0
    %338 = vmatpush1.bf16.msra.mxu0 0
    %339 = vmatprep.subr.bf16.mxu0 0
    %340 = vmatpush1.bf16.msra.mxu0 0
    %341 = vmatprep.mubr.bf16.mxu0 0
    %342 = vmatmul.mubr.bf16.gmra.mrb[0].mxu0 %v304
    %v343 = vpop.f32.mrb[0].mxu0
    %v344 = vadd.f32 %v276, %v343
    %v345 = vpop.f32.mrb[0].mxu0
    %v346 = vadd.f32 %v276, %v345
    %v347 = vpop.f32.mrb[0].mxu0
    %v348 = vadd.f32 %v281, %v347
    %v349 = vpop.f32.mrb[0].mxu0
    %v350 = vadd.f32 %v281, %v349
    %351 = vmatprep.mubr.bf16.mxu0 0
    %352 = vmatmul.mubr.bf16.gmra.mrb[0].mxu0 %v307
    %v353 = vpop.f32.mrb[0].mxu0
    %v354 = vadd.f32 %v286, %v353
    %v355 = vpop.f32.mrb[0].mxu0
    %v356 = vadd.f32 %v286, %v355
    %v357 = vpop.f32.mrb[0].mxu0
    %v358 = vadd.f32 %v291, %v357
    %v359 = vpop.f32.mrb[0].mxu0
    %v360 = vadd.f32 %v291, %v359
    %361 = vdwg.mxu0
    %362 = vrot.lane.b32.xlu0 %v172, 1
    %v363 = vpop.permute.xlu0 %362
    %364 = vrot.lane.b32.xlu0 %v176, 1
    %v365 = vpop.permute.xlu0 %364
    %366 = vrot.lane.b32.xlu0 %v182, 1
    %v367 = vpop.permute.xlu0 %366
    %368 = vrot.lane.b32.xlu0 %v186, 1
    %v369 = vpop.permute.xlu0 %368
    %370 = vrot.lane.b32.xlu0 %v174, 1
    %v371 = vpop.permute.xlu0 %370
    %372 = vrot.lane.b32.xlu0 %v178, 1
    %v373 = vpop.permute.xlu0 %372
    %374 = vrot.lane.b32.xlu0 %v184, 1
    %v375 = vpop.permute.xlu0 %374
    %376 = vrot.lane.b32.xlu0 %v188, 1
    %v377 = vpop.permute.xlu0 %376
    %vm378 = vcmp.lt.s32.totalorder %v80, 1
    %v379 = vsel %vm378, %v363, %v371
    %v380 = vsel %vm378, %v365, %v373
    %v381 = vsel %vm378, %v367, %v375
    %v382 = vsel %vm378, %v369, %v377
    %v383 = vsel %vm378, %v371, %v363
    %v384 = vsel %vm378, %v373, %v365
    %v385 = vsel %vm378, %v375, %v367
    %v386 = vsel %vm378, %v377, %v369
    %v387 = vsel %vm81, 1, 0
    %v388 = vlaneseq
    %v389 = vshrl.u32 %v388, 7
    %v390 = vsub.s32 0, %v389
    %v391 = vrot.slane %v387, %v390
    %vm392 = vcmp.eq.s32.totalorder %v391, 1
    %v393 = vsel %vm392, 0.0, %v383
    %v394 = vsel %vm392, 0.0, %v379
    %v395 = vsel %vm392, 0.0, %v384
    %v396 = vsel %vm392, 0.0, %v380
    %v397 = vsel %vm392, 0.0, %v385
    %v398 = vsel %vm392, 0.0, %v381
    %v399 = vsel %vm392, 0.0, %v386
    %v400 = vsel %vm392, 0.0, %v382
    %v401 = vadd.f32 %v344, %v393
    %v402 = vadd.f32 %v346, %v394
    %v403 = vadd.f32 %v348, %v395
    %v404 = vadd.f32 %v350, %v396
    %v405 = vadd.f32 %v354, %v397
    %v406 = vadd.f32 %v356, %v398
    %v407 = vadd.f32 %v358, %v399
    %v408 = vadd.f32 %v360, %v400
    %409 = vrot.lane.b32.xlu0 %v251, 127
    %v410 = vpop.permute.xlu0 %409
    %411 = vrot.lane.b32.xlu0 %v255, 127
    %v412 = vpop.permute.xlu0 %411
    %413 = vrot.lane.b32.xlu0 %v261, 127
    %v414 = vpop.permute.xlu0 %413
    %415 = vrot.lane.b32.xlu0 %v265, 127
    %v416 = vpop.permute.xlu0 %415
    %417 = vrot.lane.b32.xlu0 %v253, 127
    %v418 = vpop.permute.xlu0 %417
    %419 = vrot.lane.b32.xlu0 %v257, 127
    %v420 = vpop.permute.xlu0 %419
    %421 = vrot.lane.b32.xlu0 %v263, 127
    %v422 = vpop.permute.xlu0 %421
    %423 = vrot.lane.b32.xlu0 %v267, 127
    %v424 = vpop.permute.xlu0 %423
    %vm425 = vcmp.lt.s32.totalorder %v80, 127
    %v426 = vsel %vm425, %v410, %v418
    %v427 = vsel %vm425, %v412, %v420
    %v428 = vsel %vm425, %v414, %v422
    %v429 = vsel %vm425, %v416, %v424
    %v430 = vsel %vm425, %v418, %v410
    %v431 = vsel %vm425, %v420, %v412
    %v432 = vsel %vm425, %v422, %v414
    %v433 = vsel %vm425, %v424, %v416
    %v434 = vsel %vm82, 1, 0
    %v435 = vlaneseq
    %v436 = vshrl.u32 %v435, 7
    %v437 = vsub.s32 0, %v436
    %v438 = vrot.slane %v434, %v437
    %vm439 = vcmp.eq.s32.totalorder %v438, 1
    %v440 = vsel %vm439, 0.0, %v426
    %v441 = vsel %vm439, 0.0, %v430
    %v442 = vsel %vm439, 0.0, %v427
    %v443 = vsel %vm439, 0.0, %v431
    %v444 = vsel %vm439, 0.0, %v428
    %v445 = vsel %vm439, 0.0, %v432
    %v446 = vsel %vm439, 0.0, %v429
    %v447 = vsel %vm439, 0.0, %v433
    %v448 = vadd.f32 %v401, %v440
    %v449 = vadd.f32 %v402, %v441
    %v450 = vadd.f32 %v403, %v442
    %v451 = vadd.f32 %v404, %v443
    %v452 = vadd.f32 %v405, %v444
    %v453 = vadd.f32 %v406, %v445
    %v454 = vadd.f32 %v407, %v446
    %v455 = vadd.f32 %v408, %v447
    %vm456 = vcmp.gt.f32.partialorder %v448, 0.0
    %vm457 = vcmp.gt.f32.partialorder %v449, 0.0
    %vm458 = vcmp.gt.f32.partialorder %v450, 0.0
    %vm459 = vcmp.gt.f32.partialorder %v451, 0.0
    %vm460 = vcmp.gt.f32.partialorder %v452, 0.0
    %vm461 = vcmp.gt.f32.partialorder %v453, 0.0
    %vm462 = vcmp.gt.f32.partialorder %v454, 0.0
    %vm463 = vcmp.gt.f32.partialorder %v455, 0.0
    %v464 = vmul.f32 %v448, 0.2
    %v465 = vmul.f32 %v449, 0.2
    %v466 = vmul.f32 %v450, 0.2
    %v467 = vmul.f32 %v451, 0.2
    %v468 = vmul.f32 %v452, 0.2
    %v469 = vmul.f32 %v453, 0.2
    %v470 = vmul.f32 %v454, 0.2
    %v471 = vmul.f32 %v455, 0.2
    %v472 = vsel %vm456, %v448, %v464
    %v473 = vsel %vm457, %v449, %v465
    %v474 = vsel %vm458, %v450, %v466
    %v475 = vsel %vm459, %v451, %v467
    %v476 = vsel %vm460, %v452, %v468
    %v477 = vsel %vm461, %v453, %v469
    %v478 = vsel %vm462, %v454, %v470
    %v479 = vsel %vm463, %v455, %v471
    %v480 = vpack.c.bf16 %v474, %v472
    %v481 = vpack.c.bf16 %v475, %v473
    %v482 = vpack.c.bf16 %v478, %v476
    %v483 = vpack.c.bf16 %v479, %v477
    %v484 = vld [vmem:[%s2] sm:$0xf]
    %v485 = vld [vmem:[%s2 + $0x4] sm:$0xf]
    %v486 = vld [vmem:[%s2 + $0x8] sm:$0xf]
    %v487 = vld [vmem:[%s2 + $0xc] sm:$0xf]
    %v492 = vunpack.c.l.b16 %v484
    %v493 = vunpack.c.l.b16 %v485
    %v494 = vunpack.c.l.b16 %v486
    %v495 = vunpack.c.l.b16 %v487
    %v496 = vpack.c.b16 %v493, %v492
    %v497 = vpack.c.b16 %v495, %v494
    %v499 = vsel %vm130, %v496, 0
    %v502 = vsel %vm130, %v497, 0
    %504 = vmatprep.subr.bf16.mxu0 %v481
    %505 = vmatpush1.bf16.msra.mxu0 %v480
    %506 = vmatprep.subr.bf16.mxu0 %v483
    %507 = vmatpush1.bf16.msra.mxu0 %v482
    %508 = vmatprep.subr.bf16.mxu0 0
    %509 = vmatpush1.bf16.msra.mxu0 0
    %510 = vmatprep.subr.bf16.mxu0 0
    %511 = vmatpush1.bf16.msra.mxu0 0
    %512 = vmatprep.subr.bf16.mxu0 0
    %513 = vmatpush1.bf16.msra.mxu0 0
    %514 = vmatprep.subr.bf16.mxu0 0
    %515 = vmatpush1.bf16.msra.mxu0 0
    %516 = vmatprep.subr.bf16.mxu0 0
    %517 = vmatpush1.bf16.msra.mxu0 0
    %518 = vmatprep.subr.bf16.mxu0 0
    %519 = vmatpush1.bf16.msra.mxu0 0
    %520 = vmatprep.subr.bf16.mxu0 0
    %521 = vmatpush1.bf16.msra.mxu0 0
    %522 = vmatprep.subr.bf16.mxu0 0
    %523 = vmatpush1.bf16.msra.mxu0 0
    %524 = vmatprep.subr.bf16.mxu0 0
    %525 = vmatpush1.bf16.msra.mxu0 0
    %526 = vmatprep.subr.bf16.mxu0 0
    %527 = vmatpush1.bf16.msra.mxu0 0
    %528 = vmatprep.subr.bf16.mxu0 0
    %529 = vmatpush1.bf16.msra.mxu0 0
    %530 = vmatprep.subr.bf16.mxu0 0
    %531 = vmatpush1.bf16.msra.mxu0 0
    %532 = vmatprep.subr.bf16.mxu0 0
    %533 = vmatpush1.bf16.msra.mxu0 0
    %534 = vmatprep.subr.bf16.mxu0 0
    %535 = vmatpush1.bf16.msra.mxu0 0
    %536 = vmatprep.mubr.bf16.mxu0 0
    %537 = vmatmul.mubr.bf16.gmra.mrb[0].mxu0 %v499
    %v538 = vpop.f32.mrb[0].mxu0
    %v539 = vadd.f32 0.0, %v538
    %v540 = vpop.f32.mrb[0].mxu0
    %v541 = vadd.f32 0.0, %v540
    %v542 = vpop.f32.mrb[0].mxu0
    %v543 = vadd.f32 0.0, %v542
    %v544 = vpop.f32.mrb[0].mxu0
    %v545 = vadd.f32 0.0, %v544
    %546 = vmatprep.mubr.bf16.mxu0 0
    %547 = vmatmul.mubr.bf16.gmra.mrb[0].mxu0 %v502
    %v548 = vpop.f32.mrb[0].mxu0
    %v549 = vadd.f32 0.0, %v548
    %v550 = vpop.f32.mrb[0].mxu0
    %v551 = vadd.f32 0.0, %v550
    %v552 = vpop.f32.mrb[0].mxu0
    %v553 = vadd.f32 0.0, %v552
    %v554 = vpop.f32.mrb[0].mxu0
    %v555 = vadd.f32 0.0, %v554
    %556 = vdwg.mxu0
    %s557 = scalar_lea.vmem %s2, 16
    %v558 = vld [vmem:[%s557] sm:$0xf]
    %v559 = vld [vmem:[%s557 + $0x4] sm:$0xf]
    %v560 = vld [vmem:[%s557 + $0x8] sm:$0xf]
    %v561 = vld [vmem:[%s557 + $0xc] sm:$0xf]
    %s562 = scalar_lea.vmem %s2, 32
    %v563 = vld [vmem:[%s562] sm:$0xf]
    %v564 = vld [vmem:[%s562 + $0x4] sm:$0xf]
    %v565 = vld [vmem:[%s562 + $0x8] sm:$0xf]
    %v566 = vld [vmem:[%s562 + $0xc] sm:$0xf]
    %v571 = vunpack.c.l.b16 %v563
    %v572 = vunpack.c.l.b16 %v564
    %v573 = vunpack.c.l.b16 %v565
    %v574 = vunpack.c.l.b16 %v566
    %v575 = vpack.c.b16 %v572, %v571
    %v576 = vpack.c.b16 %v574, %v573
    %v578 = vsel %vm130, %v575, 0
    %v581 = vsel %vm130, %v576, 0
    %583 = vmatprep.subr.bf16.mxu0 %v481
    %584 = vmatpush1.bf16.msra.mxu0 %v480
    %585 = vmatprep.subr.bf16.mxu0 %v483
    %586 = vmatpush1.bf16.msra.mxu0 %v482
    %587 = vmatprep.subr.bf16.mxu0 0
    %588 = vmatpush1.bf16.msra.mxu0 0
    %589 = vmatprep.subr.bf16.mxu0 0
    %590 = vmatpush1.bf16.msra.mxu0 0
    %591 = vmatprep.subr.bf16.mxu0 0
    %592 = vmatpush1.bf16.msra.mxu0 0
    %593 = vmatprep.subr.bf16.mxu0 0
    %594 = vmatpush1.bf16.msra.mxu0 0
    %595 = vmatprep.subr.bf16.mxu0 0
    %596 = vmatpush1.bf16.msra.mxu0 0
    %597 = vmatprep.subr.bf16.mxu0 0
    %598 = vmatpush1.bf16.msra.mxu0 0
    %599 = vmatprep.subr.bf16.mxu0 0
    %600 = vmatpush1.bf16.msra.mxu0 0
    %601 = vmatprep.subr.bf16.mxu0 0
    %602 = vmatpush1.bf16.msra.mxu0 0
    %603 = vmatprep.subr.bf16.mxu0 0
    %604 = vmatpush1.bf16.msra.mxu0 0
    %605 = vmatprep.subr.bf16.mxu0 0
    %606 = vmatpush1.bf16.msra.mxu0 0
    %607 = vmatprep.subr.bf16.mxu0 0
    %608 = vmatpush1.bf16.msra.mxu0 0
    %609 = vmatprep.subr.bf16.mxu0 0
    %610 = vmatpush1.bf16.msra.mxu0 0
    %611 = vmatprep.subr.bf16.mxu0 0
    %612 = vmatpush1.bf16.msra.mxu0 0
    %613 = vmatprep.subr.bf16.mxu0 0
    %614 = vmatpush1.bf16.msra.mxu0 0
    %615 = vmatprep.mubr.bf16.mxu0 0
    %616 = vmatmul.mubr.bf16.gmra.mrb[0].mxu0 %v578
    %v617 = vpop.f32.mrb[0].mxu0
    %v618 = vadd.f32 0.0, %v617
    %v619 = vpop.f32.mrb[0].mxu0
    %v620 = vadd.f32 0.0, %v619
    %v621 = vpop.f32.mrb[0].mxu0
    %v622 = vadd.f32 0.0, %v621
    %v623 = vpop.f32.mrb[0].mxu0
    %v624 = vadd.f32 0.0, %v623
    %625 = vmatprep.mubr.bf16.mxu0 0
    %626 = vmatmul.mubr.bf16.gmra.mrb[0].mxu0 %v581
    %v627 = vpop.f32.mrb[0].mxu0
    %v628 = vadd.f32 0.0, %v627
    %v629 = vpop.f32.mrb[0].mxu0
    %v630 = vadd.f32 0.0, %v629
    %v631 = vpop.f32.mrb[0].mxu0
    %v632 = vadd.f32 0.0, %v631
    %v633 = vpop.f32.mrb[0].mxu0
    %v634 = vadd.f32 0.0, %v633
    %635 = vdwg.mxu0
    %v636 = vld [vmem:[%s9] sm:$0xff]
    %v637 = vld [vmem:[%s9 + $0x8] sm:$0xff]
    %v638 = vld [vmem:[%s9 + $0x10] sm:$0xff]
    %v639 = vld [vmem:[%s9 + $0x18] sm:$0xff]
    %641 = vset.pattern.permute.xlu0 0
    %642 = vperm.xlu0 %641, %v636
    %v643 = vpop.permute.xlu0 %642
    %646 = vset.pattern.permute.xlu0 0
    %647 = vperm.xlu0 %646, %v637
    %v648 = vpop.permute.xlu0 %647
    %651 = vset.pattern.permute.xlu0 0
    %652 = vperm.xlu0 %651, %v638
    %v653 = vpop.permute.xlu0 %652
    %656 = vset.pattern.permute.xlu0 0
    %657 = vperm.xlu0 %656, %v639
    %v658 = vpop.permute.xlu0 %657
    %v664 = vunpack.c.l.b16 %v558
    %v665 = vunpack.c.l.b16 %v559
    %v666 = vunpack.c.l.b16 %v560
    %v667 = vunpack.c.l.b16 %v561
    %v668 = vpack.c.b16 %v665, %v664
    %v669 = vpack.c.b16 %v667, %v666
    %v671 = vsel %vm130, %v668, 0
    %v674 = vsel %vm130, %v669, 0
    %676 = vmatprep.subr.bf16.mxu0 %v481
    %677 = vmatpush1.bf16.msra.mxu0 %v480
    %678 = vmatprep.subr.bf16.mxu0 %v483
    %679 = vmatpush1.bf16.msra.mxu0 %v482
    %680 = vmatprep.subr.bf16.mxu0 0
    %681 = vmatpush1.bf16.msra.mxu0 0
    %682 = vmatprep.subr.bf16.mxu0 0
    %683 = vmatpush1.bf16.msra.mxu0 0
    %684 = vmatprep.subr.bf16.mxu0 0
    %685 = vmatpush1.bf16.msra.mxu0 0
    %686 = vmatprep.subr.bf16.mxu0 0
    %687 = vmatpush1.bf16.msra.mxu0 0
    %688 = vmatprep.subr.bf16.mxu0 0
    %689 = vmatpush1.bf16.msra.mxu0 0
    %690 = vmatprep.subr.bf16.mxu0 0
    %691 = vmatpush1.bf16.msra.mxu0 0
    %692 = vmatprep.subr.bf16.mxu0 0
    %693 = vmatpush1.bf16.msra.mxu0 0
    %694 = vmatprep.subr.bf16.mxu0 0
    %695 = vmatpush1.bf16.msra.mxu0 0
    %696 = vmatprep.subr.bf16.mxu0 0
    %697 = vmatpush1.bf16.msra.mxu0 0
    %698 = vmatprep.subr.bf16.mxu0 0
    %699 = vmatpush1.bf16.msra.mxu0 0
    %700 = vmatprep.subr.bf16.mxu0 0
    %701 = vmatpush1.bf16.msra.mxu0 0
    %702 = vmatprep.subr.bf16.mxu0 0
    %703 = vmatpush1.bf16.msra.mxu0 0
    %704 = vmatprep.subr.bf16.mxu0 0
    %705 = vmatpush1.bf16.msra.mxu0 0
    %706 = vmatprep.subr.bf16.mxu0 0
    %707 = vmatpush1.bf16.msra.mxu0 0
    %708 = vmatprep.mubr.bf16.mxu0 0
    %709 = vmatmul.mubr.bf16.gmra.mrb[0].mxu0 %v671
    %v710 = vpop.f32.mrb[0].mxu0
    %v711 = vadd.f32 %v643, %v710
    %v712 = vpop.f32.mrb[0].mxu0
    %v713 = vadd.f32 %v643, %v712
    %v714 = vpop.f32.mrb[0].mxu0
    %v715 = vadd.f32 %v648, %v714
    %v716 = vpop.f32.mrb[0].mxu0
    %v717 = vadd.f32 %v648, %v716
    %718 = vmatprep.mubr.bf16.mxu0 0
    %719 = vmatmul.mubr.bf16.gmra.mrb[0].mxu0 %v674
    %v720 = vpop.f32.mrb[0].mxu0
    %v721 = vadd.f32 %v653, %v720
    %v722 = vpop.f32.mrb[0].mxu0
    %v723 = vadd.f32 %v653, %v722
    %v724 = vpop.f32.mrb[0].mxu0
    %v725 = vadd.f32 %v658, %v724
    %v726 = vpop.f32.mrb[0].mxu0
    %v727 = vadd.f32 %v658, %v726
    %728 = vdwg.mxu0
    %729 = vrot.lane.b32.xlu0 %v539, 1
    %v730 = vpop.permute.xlu0 %729
    %731 = vrot.lane.b32.xlu0 %v543, 1
    %v732 = vpop.permute.xlu0 %731
    %733 = vrot.lane.b32.xlu0 %v549, 1
    %v734 = vpop.permute.xlu0 %733
    %735 = vrot.lane.b32.xlu0 %v553, 1
    %v736 = vpop.permute.xlu0 %735
    %737 = vrot.lane.b32.xlu0 %v541, 1
    %v738 = vpop.permute.xlu0 %737
    %739 = vrot.lane.b32.xlu0 %v545, 1
    %v740 = vpop.permute.xlu0 %739
    %741 = vrot.lane.b32.xlu0 %v551, 1
    %v742 = vpop.permute.xlu0 %741
    %743 = vrot.lane.b32.xlu0 %v555, 1
    %v744 = vpop.permute.xlu0 %743
    %v745 = vsel %vm378, %v730, %v738
    %v746 = vsel %vm378, %v732, %v740
    %v747 = vsel %vm378, %v734, %v742
    %v748 = vsel %vm378, %v736, %v744
    %v749 = vsel %vm378, %v738, %v730
    %v750 = vsel %vm378, %v740, %v732
    %v751 = vsel %vm378, %v742, %v734
    %v752 = vsel %vm378, %v744, %v736
    %v753 = vsel %vm392, 0.0, %v749
    %v754 = vsel %vm392, 0.0, %v745
    %v755 = vsel %vm392, 0.0, %v750
    %v756 = vsel %vm392, 0.0, %v746
    %v757 = vsel %vm392, 0.0, %v751
    %v758 = vsel %vm392, 0.0, %v747
    %v759 = vsel %vm392, 0.0, %v752
    %v760 = vsel %vm392, 0.0, %v748
    %v761 = vadd.f32 %v711, %v753
    %v762 = vadd.f32 %v713, %v754
    %v763 = vadd.f32 %v715, %v755
    %v764 = vadd.f32 %v717, %v756
    %v765 = vadd.f32 %v721, %v757
    %v766 = vadd.f32 %v723, %v758
    %v767 = vadd.f32 %v725, %v759
    %v768 = vadd.f32 %v727, %v760
    %769 = vrot.lane.b32.xlu0 %v618, 127
    %v770 = vpop.permute.xlu0 %769
    %771 = vrot.lane.b32.xlu0 %v622, 127
    %v772 = vpop.permute.xlu0 %771
    %773 = vrot.lane.b32.xlu0 %v628, 127
    %v774 = vpop.permute.xlu0 %773
    %775 = vrot.lane.b32.xlu0 %v632, 127
    %v776 = vpop.permute.xlu0 %775
    %777 = vrot.lane.b32.xlu0 %v620, 127
    %v778 = vpop.permute.xlu0 %777
    %779 = vrot.lane.b32.xlu0 %v624, 127
    %v780 = vpop.permute.xlu0 %779
    %781 = vrot.lane.b32.xlu0 %v630, 127
    %v782 = vpop.permute.xlu0 %781
    %783 = vrot.lane.b32.xlu0 %v634, 127
    %v784 = vpop.permute.xlu0 %783
    %v785 = vsel %vm425, %v770, %v778
    %v786 = vsel %vm425, %v772, %v780
    %v787 = vsel %vm425, %v774, %v782
    %v788 = vsel %vm425, %v776, %v784
    %v789 = vsel %vm425, %v778, %v770
    %v790 = vsel %vm425, %v780, %v772
    %v791 = vsel %vm425, %v782, %v774
    %v792 = vsel %vm425, %v784, %v776
    %v793 = vsel %vm439, 0.0, %v785
    %v794 = vsel %vm439, 0.0, %v789
    %v795 = vsel %vm439, 0.0, %v786
    %v796 = vsel %vm439, 0.0, %v790
    %v797 = vsel %vm439, 0.0, %v787
    %v798 = vsel %vm439, 0.0, %v791
    %v799 = vsel %vm439, 0.0, %v788
    %v800 = vsel %vm439, 0.0, %v792
    %v801 = vadd.f32 %v761, %v793
    %v802 = vadd.f32 %v762, %v794
    %v803 = vadd.f32 %v763, %v795
    %v804 = vadd.f32 %v764, %v796
    %v805 = vadd.f32 %v765, %v797
    %v806 = vadd.f32 %v766, %v798
    %v807 = vadd.f32 %v767, %v799
    %v808 = vadd.f32 %v768, %v800
    %v809 = vunpack.c.l.bf16 %v100
    %v810 = vunpack.c.l.bf16 %v112
    %v811 = vunpack.c.h.bf16 %v100
    %v812 = vunpack.c.h.bf16 %v112
    %v813 = vunpack.c.l.bf16 %v101
    %v814 = vunpack.c.l.bf16 %v113
    %v815 = vunpack.c.h.bf16 %v101
    %v816 = vunpack.c.h.bf16 %v113
    %v817 = vadd.f32 %v801, %v809
    %v818 = vadd.f32 %v802, %v810
    %v819 = vadd.f32 %v803, %v811
    %v820 = vadd.f32 %v804, %v812
    %v821 = vadd.f32 %v805, %v813
    %v822 = vadd.f32 %v806, %v814
    %v823 = vadd.f32 %v807, %v815
    %v824 = vadd.f32 %v808, %v816
    %v825 = vpack.c.bf16 %v819, %v817
    %v826 = vpack.c.bf16 %v820, %v818
    %v827 = vpack.c.bf16 %v823, %v821
    %v828 = vpack.c.bf16 %v824, %v822
    %v829 = vld [vmem:[%s3] sm:$0xf]
    %v830 = vld [vmem:[%s3 + $0x4] sm:$0xf]
    %v831 = vld [vmem:[%s3 + $0x8] sm:$0xf]
    %v832 = vld [vmem:[%s3 + $0xc] sm:$0xf]
    %v837 = vunpack.c.l.b16 %v829
    %v838 = vunpack.c.l.b16 %v830
    %v839 = vunpack.c.l.b16 %v831
    %v840 = vunpack.c.l.b16 %v832
    %v841 = vpack.c.b16 %v838, %v837
    %v842 = vpack.c.b16 %v840, %v839
    %v844 = vsel %vm130, %v841, 0
    %v847 = vsel %vm130, %v842, 0
    %849 = vmatprep.subr.bf16.mxu0 %v826
    %850 = vmatpush1.bf16.msra.mxu0 %v825
    %851 = vmatprep.subr.bf16.mxu0 %v828
    %852 = vmatpush1.bf16.msra.mxu0 %v827
    %853 = vmatprep.subr.bf16.mxu0 0
    %854 = vmatpush1.bf16.msra.mxu0 0
    %855 = vmatprep.subr.bf16.mxu0 0
    %856 = vmatpush1.bf16.msra.mxu0 0
    %857 = vmatprep.subr.bf16.mxu0 0
    %858 = vmatpush1.bf16.msra.mxu0 0
    %859 = vmatprep.subr.bf16.mxu0 0
    %860 = vmatpush1.bf16.msra.mxu0 0
    %861 = vmatprep.subr.bf16.mxu0 0
    %862 = vmatpush1.bf16.msra.mxu0 0
    %863 = vmatprep.subr.bf16.mxu0 0
    %864 = vmatpush1.bf16.msra.mxu0 0
    %865 = vmatprep.subr.bf16.mxu0 0
    %866 = vmatpush1.bf16.msra.mxu0 0
    %867 = vmatprep.subr.bf16.mxu0 0
    %868 = vmatpush1.bf16.msra.mxu0 0
    %869 = vmatprep.subr.bf16.mxu0 0
    %870 = vmatpush1.bf16.msra.mxu0 0
    %871 = vmatprep.subr.bf16.mxu0 0
    %872 = vmatpush1.bf16.msra.mxu0 0
    %873 = vmatprep.subr.bf16.mxu0 0
    %874 = vmatpush1.bf16.msra.mxu0 0
    %875 = vmatprep.subr.bf16.mxu0 0
    %876 = vmatpush1.bf16.msra.mxu0 0
    %877 = vmatprep.subr.bf16.mxu0 0
    %878 = vmatpush1.bf16.msra.mxu0 0
    %879 = vmatprep.subr.bf16.mxu0 0
    %880 = vmatpush1.bf16.msra.mxu0 0
    %881 = vmatprep.mubr.bf16.mxu0 0
    %882 = vmatmul.mubr.bf16.gmra.mrb[0].mxu0 %v844
    %v883 = vpop.f32.mrb[0].mxu0
    %v884 = vadd.f32 0.0, %v883
    %v885 = vpop.f32.mrb[0].mxu0
    %v886 = vadd.f32 0.0, %v885
    %v887 = vpop.f32.mrb[0].mxu0
    %v888 = vadd.f32 0.0, %v887
    %v889 = vpop.f32.mrb[0].mxu0
    %v890 = vadd.f32 0.0, %v889
    %891 = vmatprep.mubr.bf16.mxu0 0
    %892 = vmatmul.mubr.bf16.gmra.mrb[0].mxu0 %v847
    %v893 = vpop.f32.mrb[0].mxu0
    %v894 = vadd.f32 0.0, %v893
    %v895 = vpop.f32.mrb[0].mxu0
    %v896 = vadd.f32 0.0, %v895
    %v897 = vpop.f32.mrb[0].mxu0
    %v898 = vadd.f32 0.0, %v897
    %v899 = vpop.f32.mrb[0].mxu0
    %v900 = vadd.f32 0.0, %v899
    %901 = vdwg.mxu0
    %s902 = scalar_lea.vmem %s3, 16
    %v903 = vld [vmem:[%s902] sm:$0xf]
    %v904 = vld [vmem:[%s902 + $0x4] sm:$0xf]
    %v905 = vld [vmem:[%s902 + $0x8] sm:$0xf]
    %v906 = vld [vmem:[%s902 + $0xc] sm:$0xf]
    %s907 = scalar_lea.vmem %s3, 32
    %v908 = vld [vmem:[%s907] sm:$0xf]
    %v909 = vld [vmem:[%s907 + $0x4] sm:$0xf]
    %v910 = vld [vmem:[%s907 + $0x8] sm:$0xf]
    %v911 = vld [vmem:[%s907 + $0xc] sm:$0xf]
    %v916 = vunpack.c.l.b16 %v908
    %v917 = vunpack.c.l.b16 %v909
    %v918 = vunpack.c.l.b16 %v910
    %v919 = vunpack.c.l.b16 %v911
    %v920 = vpack.c.b16 %v917, %v916
    %v921 = vpack.c.b16 %v919, %v918
    %v923 = vsel %vm130, %v920, 0
    %v926 = vsel %vm130, %v921, 0
    %928 = vmatprep.subr.bf16.mxu0 %v826
    %929 = vmatpush1.bf16.msra.mxu0 %v825
    %930 = vmatprep.subr.bf16.mxu0 %v828
    %931 = vmatpush1.bf16.msra.mxu0 %v827
    %932 = vmatprep.subr.bf16.mxu0 0
    %933 = vmatpush1.bf16.msra.mxu0 0
    %934 = vmatprep.subr.bf16.mxu0 0
    %935 = vmatpush1.bf16.msra.mxu0 0
    %936 = vmatprep.subr.bf16.mxu0 0
    %937 = vmatpush1.bf16.msra.mxu0 0
    %938 = vmatprep.subr.bf16.mxu0 0
    %939 = vmatpush1.bf16.msra.mxu0 0
    %940 = vmatprep.subr.bf16.mxu0 0
    %941 = vmatpush1.bf16.msra.mxu0 0
    %942 = vmatprep.subr.bf16.mxu0 0
    %943 = vmatpush1.bf16.msra.mxu0 0
    %944 = vmatprep.subr.bf16.mxu0 0
    %945 = vmatpush1.bf16.msra.mxu0 0
    %946 = vmatprep.subr.bf16.mxu0 0
    %947 = vmatpush1.bf16.msra.mxu0 0
    %948 = vmatprep.subr.bf16.mxu0 0
    %949 = vmatpush1.bf16.msra.mxu0 0
    %950 = vmatprep.subr.bf16.mxu0 0
    %951 = vmatpush1.bf16.msra.mxu0 0
    %952 = vmatprep.subr.bf16.mxu0 0
    %953 = vmatpush1.bf16.msra.mxu0 0
    %954 = vmatprep.subr.bf16.mxu0 0
    %955 = vmatpush1.bf16.msra.mxu0 0
    %956 = vmatprep.subr.bf16.mxu0 0
    %957 = vmatpush1.bf16.msra.mxu0 0
    %958 = vmatprep.subr.bf16.mxu0 0
    %959 = vmatpush1.bf16.msra.mxu0 0
    %960 = vmatprep.mubr.bf16.mxu0 0
    %961 = vmatmul.mubr.bf16.gmra.mrb[0].mxu0 %v923
    %v962 = vpop.f32.mrb[0].mxu0
    %v963 = vadd.f32 0.0, %v962
    %v964 = vpop.f32.mrb[0].mxu0
    %v965 = vadd.f32 0.0, %v964
    %v966 = vpop.f32.mrb[0].mxu0
    %v967 = vadd.f32 0.0, %v966
    %v968 = vpop.f32.mrb[0].mxu0
    %v969 = vadd.f32 0.0, %v968
    %970 = vmatprep.mubr.bf16.mxu0 0
    %971 = vmatmul.mubr.bf16.gmra.mrb[0].mxu0 %v926
    %v972 = vpop.f32.mrb[0].mxu0
    %v973 = vadd.f32 0.0, %v972
    %v974 = vpop.f32.mrb[0].mxu0
    %v975 = vadd.f32 0.0, %v974
    %v976 = vpop.f32.mrb[0].mxu0
    %v977 = vadd.f32 0.0, %v976
    %v978 = vpop.f32.mrb[0].mxu0
    %v979 = vadd.f32 0.0, %v978
    %980 = vdwg.mxu0
    %v981 = vld [vmem:[%s10] sm:$0xff]
    %v982 = vld [vmem:[%s10 + $0x8] sm:$0xff]
    %v983 = vld [vmem:[%s10 + $0x10] sm:$0xff]
    %v984 = vld [vmem:[%s10 + $0x18] sm:$0xff]
    %986 = vset.pattern.permute.xlu0 0
    %987 = vperm.xlu0 %986, %v981
    %v988 = vpop.permute.xlu0 %987
    %991 = vset.pattern.permute.xlu0 0
    %992 = vperm.xlu0 %991, %v982
    %v993 = vpop.permute.xlu0 %992
    %996 = vset.pattern.permute.xlu0 0
    %997 = vperm.xlu0 %996, %v983
    %v998 = vpop.permute.xlu0 %997
    %1001 = vset.pattern.permute.xlu0 0
    %1002 = vperm.xlu0 %1001, %v984
    %v1003 = vpop.permute.xlu0 %1002
    %v1009 = vunpack.c.l.b16 %v903
    %v1010 = vunpack.c.l.b16 %v904
    %v1011 = vunpack.c.l.b16 %v905
    %v1012 = vunpack.c.l.b16 %v906
    %v1013 = vpack.c.b16 %v1010, %v1009
    %v1014 = vpack.c.b16 %v1012, %v1011
    %v1016 = vsel %vm130, %v1013, 0
    %v1019 = vsel %vm130, %v1014, 0
    %1021 = vmatprep.subr.bf16.mxu0 %v826
    %1022 = vmatpush1.bf16.msra.mxu0 %v825
    %1023 = vmatprep.subr.bf16.mxu0 %v828
    %1024 = vmatpush1.bf16.msra.mxu0 %v827
    %1025 = vmatprep.subr.bf16.mxu0 0
    %1026 = vmatpush1.bf16.msra.mxu0 0
    %1027 = vmatprep.subr.bf16.mxu0 0
    %1028 = vmatpush1.bf16.msra.mxu0 0
    %1029 = vmatprep.subr.bf16.mxu0 0
    %1030 = vmatpush1.bf16.msra.mxu0 0
    %1031 = vmatprep.subr.bf16.mxu0 0
    %1032 = vmatpush1.bf16.msra.mxu0 0
    %1033 = vmatprep.subr.bf16.mxu0 0
    %1034 = vmatpush1.bf16.msra.mxu0 0
    %1035 = vmatprep.subr.bf16.mxu0 0
    %1036 = vmatpush1.bf16.msra.mxu0 0
    %1037 = vmatprep.subr.bf16.mxu0 0
    %1038 = vmatpush1.bf16.msra.mxu0 0
    %1039 = vmatprep.subr.bf16.mxu0 0
    %1040 = vmatpush1.bf16.msra.mxu0 0
    %1041 = vmatprep.subr.bf16.mxu0 0
    %1042 = vmatpush1.bf16.msra.mxu0 0
    %1043 = vmatprep.subr.bf16.mxu0 0
    %1044 = vmatpush1.bf16.msra.mxu0 0
    %1045 = vmatprep.subr.bf16.mxu0 0
    %1046 = vmatpush1.bf16.msra.mxu0 0
    %1047 = vmatprep.subr.bf16.mxu0 0
    %1048 = vmatpush1.bf16.msra.mxu0 0
    %1049 = vmatprep.subr.bf16.mxu0 0
    %1050 = vmatpush1.bf16.msra.mxu0 0
    %1051 = vmatprep.subr.bf16.mxu0 0
    %1052 = vmatpush1.bf16.msra.mxu0 0
    %1053 = vmatprep.mubr.bf16.mxu0 0
    %1054 = vmatmul.mubr.bf16.gmra.mrb[0].mxu0 %v1016
    %v1055 = vpop.f32.mrb[0].mxu0
    %v1056 = vadd.f32 %v988, %v1055
    %v1057 = vpop.f32.mrb[0].mxu0
    %v1058 = vadd.f32 %v988, %v1057
    %v1059 = vpop.f32.mrb[0].mxu0
    %v1060 = vadd.f32 %v993, %v1059
    %v1061 = vpop.f32.mrb[0].mxu0
    %v1062 = vadd.f32 %v993, %v1061
    %1063 = vmatprep.mubr.bf16.mxu0 0
    %1064 = vmatmul.mubr.bf16.gmra.mrb[0].mxu0 %v1019
    %v1065 = vpop.f32.mrb[0].mxu0
    %v1066 = vadd.f32 %v998, %v1065
    %v1067 = vpop.f32.mrb[0].mxu0
    %v1068 = vadd.f32 %v998, %v1067
    %v1069 = vpop.f32.mrb[0].mxu0
    %v1070 = vadd.f32 %v1003, %v1069
    %v1071 = vpop.f32.mrb[0].mxu0
    %v1072 = vadd.f32 %v1003, %v1071
    %1073 = vdwg.mxu0
    %1074 = vrot.lane.b32.xlu0 %v884, 1
    %v1075 = vpop.permute.xlu0 %1074
    %1076 = vrot.lane.b32.xlu0 %v888, 1
    %v1077 = vpop.permute.xlu0 %1076
    %1078 = vrot.lane.b32.xlu0 %v894, 1
    %v1079 = vpop.permute.xlu0 %1078
    %1080 = vrot.lane.b32.xlu0 %v898, 1
    %v1081 = vpop.permute.xlu0 %1080
    %1082 = vrot.lane.b32.xlu0 %v886, 1
    %v1083 = vpop.permute.xlu0 %1082
    %1084 = vrot.lane.b32.xlu0 %v890, 1
    %v1085 = vpop.permute.xlu0 %1084
    %1086 = vrot.lane.b32.xlu0 %v896, 1
    %v1087 = vpop.permute.xlu0 %1086
    %1088 = vrot.lane.b32.xlu0 %v900, 1
    %v1089 = vpop.permute.xlu0 %1088
    %v1090 = vsel %vm378, %v1075, %v1083
    %v1091 = vsel %vm378, %v1077, %v1085
    %v1092 = vsel %vm378, %v1079, %v1087
    %v1093 = vsel %vm378, %v1081, %v1089
    %v1094 = vsel %vm378, %v1083, %v1075
    %v1095 = vsel %vm378, %v1085, %v1077
    %v1096 = vsel %vm378, %v1087, %v1079
    %v1097 = vsel %vm378, %v1089, %v1081
    %v1098 = vsel %vm392, 0.0, %v1094
    %v1099 = vsel %vm392, 0.0, %v1090
    %v1100 = vsel %vm392, 0.0, %v1095
    %v1101 = vsel %vm392, 0.0, %v1091
    %v1102 = vsel %vm392, 0.0, %v1096
    %v1103 = vsel %vm392, 0.0, %v1092
    %v1104 = vsel %vm392, 0.0, %v1097
    %v1105 = vsel %vm392, 0.0, %v1093
    %v1106 = vadd.f32 %v1056, %v1098
    %v1107 = vadd.f32 %v1058, %v1099
    %v1108 = vadd.f32 %v1060, %v1100
    %v1109 = vadd.f32 %v1062, %v1101
    %v1110 = vadd.f32 %v1066, %v1102
    %v1111 = vadd.f32 %v1068, %v1103
    %v1112 = vadd.f32 %v1070, %v1104
    %v1113 = vadd.f32 %v1072, %v1105
    %1114 = vrot.lane.b32.xlu0 %v963, 127
    %v1115 = vpop.permute.xlu0 %1114
    %1116 = vrot.lane.b32.xlu0 %v967, 127
    %v1117 = vpop.permute.xlu0 %1116
    %1118 = vrot.lane.b32.xlu0 %v973, 127
    %v1119 = vpop.permute.xlu0 %1118
    %1120 = vrot.lane.b32.xlu0 %v977, 127
    %v1121 = vpop.permute.xlu0 %1120
    %1122 = vrot.lane.b32.xlu0 %v965, 127
    %v1123 = vpop.permute.xlu0 %1122
    %1124 = vrot.lane.b32.xlu0 %v969, 127
    %v1125 = vpop.permute.xlu0 %1124
    %1126 = vrot.lane.b32.xlu0 %v975, 127
    %v1127 = vpop.permute.xlu0 %1126
    %1128 = vrot.lane.b32.xlu0 %v979, 127
    %v1129 = vpop.permute.xlu0 %1128
    %v1130 = vsel %vm425, %v1115, %v1123
    %v1131 = vsel %vm425, %v1117, %v1125
    %v1132 = vsel %vm425, %v1119, %v1127
    %v1133 = vsel %vm425, %v1121, %v1129
    %v1134 = vsel %vm425, %v1123, %v1115
    %v1135 = vsel %vm425, %v1125, %v1117
    %v1136 = vsel %vm425, %v1127, %v1119
    %v1137 = vsel %vm425, %v1129, %v1121
    %v1138 = vsel %vm439, 0.0, %v1130
    %v1139 = vsel %vm439, 0.0, %v1134
    %v1140 = vsel %vm439, 0.0, %v1131
    %v1141 = vsel %vm439, 0.0, %v1135
    %v1142 = vsel %vm439, 0.0, %v1132
    %v1143 = vsel %vm439, 0.0, %v1136
    %v1144 = vsel %vm439, 0.0, %v1133
    %v1145 = vsel %vm439, 0.0, %v1137
    %v1146 = vadd.f32 %v1106, %v1138
    %v1147 = vadd.f32 %v1107, %v1139
    %v1148 = vadd.f32 %v1108, %v1140
    %v1149 = vadd.f32 %v1109, %v1141
    %v1150 = vadd.f32 %v1110, %v1142
    %v1151 = vadd.f32 %v1111, %v1143
    %v1152 = vadd.f32 %v1112, %v1144
    %v1153 = vadd.f32 %v1113, %v1145
    %vm1154 = vcmp.gt.f32.partialorder %v1146, 0.0
    %vm1155 = vcmp.gt.f32.partialorder %v1147, 0.0
    %vm1156 = vcmp.gt.f32.partialorder %v1148, 0.0
    %vm1157 = vcmp.gt.f32.partialorder %v1149, 0.0
    %vm1158 = vcmp.gt.f32.partialorder %v1150, 0.0
    %vm1159 = vcmp.gt.f32.partialorder %v1151, 0.0
    %vm1160 = vcmp.gt.f32.partialorder %v1152, 0.0
    %vm1161 = vcmp.gt.f32.partialorder %v1153, 0.0
    %v1162 = vmul.f32 %v1146, 0.2
    %v1163 = vmul.f32 %v1147, 0.2
    %v1164 = vmul.f32 %v1148, 0.2
    %v1165 = vmul.f32 %v1149, 0.2
    %v1166 = vmul.f32 %v1150, 0.2
    %v1167 = vmul.f32 %v1151, 0.2
    %v1168 = vmul.f32 %v1152, 0.2
    %v1169 = vmul.f32 %v1153, 0.2
    %v1170 = vsel %vm1154, %v1146, %v1162
    %v1171 = vsel %vm1155, %v1147, %v1163
    %v1172 = vsel %vm1156, %v1148, %v1164
    %v1173 = vsel %vm1157, %v1149, %v1165
    %v1174 = vsel %vm1158, %v1150, %v1166
    %v1175 = vsel %vm1159, %v1151, %v1167
    %v1176 = vsel %vm1160, %v1152, %v1168
    %v1177 = vsel %vm1161, %v1153, %v1169
    %v1178 = vpack.c.bf16 %v1172, %v1170
    %v1179 = vpack.c.bf16 %v1173, %v1171
    %v1180 = vpack.c.bf16 %v1176, %v1174
    %v1181 = vpack.c.bf16 %v1177, %v1175
    %v1182 = vld [vmem:[%s4] sm:$0xf]
    %v1183 = vld [vmem:[%s4 + $0x4] sm:$0xf]
    %v1184 = vld [vmem:[%s4 + $0x8] sm:$0xf]
    %v1185 = vld [vmem:[%s4 + $0xc] sm:$0xf]
    %v1190 = vunpack.c.l.b16 %v1182
    %v1191 = vunpack.c.l.b16 %v1183
    %v1192 = vunpack.c.l.b16 %v1184
    %v1193 = vunpack.c.l.b16 %v1185
    %v1194 = vpack.c.b16 %v1191, %v1190
    %v1195 = vpack.c.b16 %v1193, %v1192
    %v1197 = vsel %vm130, %v1194, 0
    %v1200 = vsel %vm130, %v1195, 0
    %1202 = vmatprep.subr.bf16.mxu0 %v1179
    %1203 = vmatpush1.bf16.msra.mxu0 %v1178
    %1204 = vmatprep.subr.bf16.mxu0 %v1181
    %1205 = vmatpush1.bf16.msra.mxu0 %v1180
    %1206 = vmatprep.subr.bf16.mxu0 0
    %1207 = vmatpush1.bf16.msra.mxu0 0
    %1208 = vmatprep.subr.bf16.mxu0 0
    %1209 = vmatpush1.bf16.msra.mxu0 0
    %1210 = vmatprep.subr.bf16.mxu0 0
    %1211 = vmatpush1.bf16.msra.mxu0 0
    %1212 = vmatprep.subr.bf16.mxu0 0
    %1213 = vmatpush1.bf16.msra.mxu0 0
    %1214 = vmatprep.subr.bf16.mxu0 0
    %1215 = vmatpush1.bf16.msra.mxu0 0
    %1216 = vmatprep.subr.bf16.mxu0 0
    %1217 = vmatpush1.bf16.msra.mxu0 0
    %1218 = vmatprep.subr.bf16.mxu0 0
    %1219 = vmatpush1.bf16.msra.mxu0 0
    %1220 = vmatprep.subr.bf16.mxu0 0
    %1221 = vmatpush1.bf16.msra.mxu0 0
    %1222 = vmatprep.subr.bf16.mxu0 0
    %1223 = vmatpush1.bf16.msra.mxu0 0
    %1224 = vmatprep.subr.bf16.mxu0 0
    %1225 = vmatpush1.bf16.msra.mxu0 0
    %1226 = vmatprep.subr.bf16.mxu0 0
    %1227 = vmatpush1.bf16.msra.mxu0 0
    %1228 = vmatprep.subr.bf16.mxu0 0
    %1229 = vmatpush1.bf16.msra.mxu0 0
    %1230 = vmatprep.subr.bf16.mxu0 0
    %1231 = vmatpush1.bf16.msra.mxu0 0
    %1232 = vmatprep.subr.bf16.mxu0 0
    %1233 = vmatpush1.bf16.msra.mxu0 0
    %1234 = vmatprep.mubr.bf16.mxu0 0
    %1235 = vmatmul.mubr.bf16.gmra.mrb[0].mxu0 %v1197
    %v1236 = vpop.f32.mrb[0].mxu0
    %v1237 = vadd.f32 0.0, %v1236
    %v1238 = vpop.f32.mrb[0].mxu0
    %v1239 = vadd.f32 0.0, %v1238
    %v1240 = vpop.f32.mrb[0].mxu0
    %v1241 = vadd.f32 0.0, %v1240
    %v1242 = vpop.f32.mrb[0].mxu0
    %v1243 = vadd.f32 0.0, %v1242
    %1244 = vmatprep.mubr.bf16.mxu0 0
    %1245 = vmatmul.mubr.bf16.gmra.mrb[0].mxu0 %v1200
    %v1246 = vpop.f32.mrb[0].mxu0
    %v1247 = vadd.f32 0.0, %v1246
    %v1248 = vpop.f32.mrb[0].mxu0
    %v1249 = vadd.f32 0.0, %v1248
    %v1250 = vpop.f32.mrb[0].mxu0
    %v1251 = vadd.f32 0.0, %v1250
    %v1252 = vpop.f32.mrb[0].mxu0
    %v1253 = vadd.f32 0.0, %v1252
    %1254 = vdwg.mxu0
    %s1255 = scalar_lea.vmem %s4, 16
    %v1256 = vld [vmem:[%s1255] sm:$0xf]
    %v1257 = vld [vmem:[%s1255 + $0x4] sm:$0xf]
    %v1258 = vld [vmem:[%s1255 + $0x8] sm:$0xf]
    %v1259 = vld [vmem:[%s1255 + $0xc] sm:$0xf]
    %s1260 = scalar_lea.vmem %s4, 32
    %v1261 = vld [vmem:[%s1260] sm:$0xf]
    %v1262 = vld [vmem:[%s1260 + $0x4] sm:$0xf]
    %v1263 = vld [vmem:[%s1260 + $0x8] sm:$0xf]
    %v1264 = vld [vmem:[%s1260 + $0xc] sm:$0xf]
    %v1269 = vunpack.c.l.b16 %v1261
    %v1270 = vunpack.c.l.b16 %v1262
    %v1271 = vunpack.c.l.b16 %v1263
    %v1272 = vunpack.c.l.b16 %v1264
    %v1273 = vpack.c.b16 %v1270, %v1269
    %v1274 = vpack.c.b16 %v1272, %v1271
    %v1276 = vsel %vm130, %v1273, 0
    %v1279 = vsel %vm130, %v1274, 0
    %1281 = vmatprep.subr.bf16.mxu0 %v1179
    %1282 = vmatpush1.bf16.msra.mxu0 %v1178
    %1283 = vmatprep.subr.bf16.mxu0 %v1181
    %1284 = vmatpush1.bf16.msra.mxu0 %v1180
    %1285 = vmatprep.subr.bf16.mxu0 0
    %1286 = vmatpush1.bf16.msra.mxu0 0
    %1287 = vmatprep.subr.bf16.mxu0 0
    %1288 = vmatpush1.bf16.msra.mxu0 0
    %1289 = vmatprep.subr.bf16.mxu0 0
    %1290 = vmatpush1.bf16.msra.mxu0 0
    %1291 = vmatprep.subr.bf16.mxu0 0
    %1292 = vmatpush1.bf16.msra.mxu0 0
    %1293 = vmatprep.subr.bf16.mxu0 0
    %1294 = vmatpush1.bf16.msra.mxu0 0
    %1295 = vmatprep.subr.bf16.mxu0 0
    %1296 = vmatpush1.bf16.msra.mxu0 0
    %1297 = vmatprep.subr.bf16.mxu0 0
    %1298 = vmatpush1.bf16.msra.mxu0 0
    %1299 = vmatprep.subr.bf16.mxu0 0
    %1300 = vmatpush1.bf16.msra.mxu0 0
    %1301 = vmatprep.subr.bf16.mxu0 0
    %1302 = vmatpush1.bf16.msra.mxu0 0
    %1303 = vmatprep.subr.bf16.mxu0 0
    %1304 = vmatpush1.bf16.msra.mxu0 0
    %1305 = vmatprep.subr.bf16.mxu0 0
    %1306 = vmatpush1.bf16.msra.mxu0 0
    %1307 = vmatprep.subr.bf16.mxu0 0
    %1308 = vmatpush1.bf16.msra.mxu0 0
    %1309 = vmatprep.subr.bf16.mxu0 0
    %1310 = vmatpush1.bf16.msra.mxu0 0
    %1311 = vmatprep.subr.bf16.mxu0 0
    %1312 = vmatpush1.bf16.msra.mxu0 0
    %1313 = vmatprep.mubr.bf16.mxu0 0
    %1314 = vmatmul.mubr.bf16.gmra.mrb[0].mxu0 %v1276
    %v1315 = vpop.f32.mrb[0].mxu0
    %v1316 = vadd.f32 0.0, %v1315
    %v1317 = vpop.f32.mrb[0].mxu0
    %v1318 = vadd.f32 0.0, %v1317
    %v1319 = vpop.f32.mrb[0].mxu0
    %v1320 = vadd.f32 0.0, %v1319
    %v1321 = vpop.f32.mrb[0].mxu0
    %v1322 = vadd.f32 0.0, %v1321
    %1323 = vmatprep.mubr.bf16.mxu0 0
    %1324 = vmatmul.mubr.bf16.gmra.mrb[0].mxu0 %v1279
    %v1325 = vpop.f32.mrb[0].mxu0
    %v1326 = vadd.f32 0.0, %v1325
    %v1327 = vpop.f32.mrb[0].mxu0
    %v1328 = vadd.f32 0.0, %v1327
    %v1329 = vpop.f32.mrb[0].mxu0
    %v1330 = vadd.f32 0.0, %v1329
    %v1331 = vpop.f32.mrb[0].mxu0
    %v1332 = vadd.f32 0.0, %v1331
    %1333 = vdwg.mxu0
    %v1334 = vld [vmem:[%s11] sm:$0xff]
    %v1335 = vld [vmem:[%s11 + $0x8] sm:$0xff]
    %v1336 = vld [vmem:[%s11 + $0x10] sm:$0xff]
    %v1337 = vld [vmem:[%s11 + $0x18] sm:$0xff]
    %1339 = vset.pattern.permute.xlu0 0
    %1340 = vperm.xlu0 %1339, %v1334
    %v1341 = vpop.permute.xlu0 %1340
    %1344 = vset.pattern.permute.xlu0 0
    %1345 = vperm.xlu0 %1344, %v1335
    %v1346 = vpop.permute.xlu0 %1345
    %1349 = vset.pattern.permute.xlu0 0
    %1350 = vperm.xlu0 %1349, %v1336
    %v1351 = vpop.permute.xlu0 %1350
    %1354 = vset.pattern.permute.xlu0 0
    %1355 = vperm.xlu0 %1354, %v1337
    %v1356 = vpop.permute.xlu0 %1355
    %v1362 = vunpack.c.l.b16 %v1256
    %v1363 = vunpack.c.l.b16 %v1257
    %v1364 = vunpack.c.l.b16 %v1258
    %v1365 = vunpack.c.l.b16 %v1259
    %v1366 = vpack.c.b16 %v1363, %v1362
    %v1367 = vpack.c.b16 %v1365, %v1364
    %v1369 = vsel %vm130, %v1366, 0
    %v1372 = vsel %vm130, %v1367, 0
    %1374 = vmatprep.subr.bf16.mxu0 %v1179
    %1375 = vmatpush1.bf16.msra.mxu0 %v1178
    %1376 = vmatprep.subr.bf16.mxu0 %v1181
    %1377 = vmatpush1.bf16.msra.mxu0 %v1180
    %1378 = vmatprep.subr.bf16.mxu0 0
    %1379 = vmatpush1.bf16.msra.mxu0 0
    %1380 = vmatprep.subr.bf16.mxu0 0
    %1381 = vmatpush1.bf16.msra.mxu0 0
    %1382 = vmatprep.subr.bf16.mxu0 0
    %1383 = vmatpush1.bf16.msra.mxu0 0
    %1384 = vmatprep.subr.bf16.mxu0 0
    %1385 = vmatpush1.bf16.msra.mxu0 0
    %1386 = vmatprep.subr.bf16.mxu0 0
    %1387 = vmatpush1.bf16.msra.mxu0 0
    %1388 = vmatprep.subr.bf16.mxu0 0
    %1389 = vmatpush1.bf16.msra.mxu0 0
    %1390 = vmatprep.subr.bf16.mxu0 0
    %1391 = vmatpush1.bf16.msra.mxu0 0
    %1392 = vmatprep.subr.bf16.mxu0 0
    %1393 = vmatpush1.bf16.msra.mxu0 0
    %1394 = vmatprep.subr.bf16.mxu0 0
    %1395 = vmatpush1.bf16.msra.mxu0 0
    %1396 = vmatprep.subr.bf16.mxu0 0
    %1397 = vmatpush1.bf16.msra.mxu0 0
    %1398 = vmatprep.subr.bf16.mxu0 0
    %1399 = vmatpush1.bf16.msra.mxu0 0
    %1400 = vmatprep.subr.bf16.mxu0 0
    %1401 = vmatpush1.bf16.msra.mxu0 0
    %1402 = vmatprep.subr.bf16.mxu0 0
    %1403 = vmatpush1.bf16.msra.mxu0 0
    %1404 = vmatprep.subr.bf16.mxu0 0
    %1405 = vmatpush1.bf16.msra.mxu0 0
    %1406 = vmatprep.mubr.bf16.mxu0 0
    %1407 = vmatmul.mubr.bf16.gmra.mrb[0].mxu0 %v1369
    %v1408 = vpop.f32.mrb[0].mxu0
    %v1409 = vadd.f32 %v1341, %v1408
    %v1410 = vpop.f32.mrb[0].mxu0
    %v1411 = vadd.f32 %v1341, %v1410
    %v1412 = vpop.f32.mrb[0].mxu0
    %v1413 = vadd.f32 %v1346, %v1412
    %v1414 = vpop.f32.mrb[0].mxu0
    %v1415 = vadd.f32 %v1346, %v1414
    %1416 = vmatprep.mubr.bf16.mxu0 0
    %1417 = vmatmul.mubr.bf16.gmra.mrb[0].mxu0 %v1372
    %v1418 = vpop.f32.mrb[0].mxu0
    %v1419 = vadd.f32 %v1351, %v1418
    %v1420 = vpop.f32.mrb[0].mxu0
    %v1421 = vadd.f32 %v1351, %v1420
    %v1422 = vpop.f32.mrb[0].mxu0
    %v1423 = vadd.f32 %v1356, %v1422
    %v1424 = vpop.f32.mrb[0].mxu0
    %v1425 = vadd.f32 %v1356, %v1424
    %1426 = vdwg.mxu0
    %1427 = vrot.lane.b32.xlu0 %v1237, 1
    %v1428 = vpop.permute.xlu0 %1427
    %1429 = vrot.lane.b32.xlu0 %v1241, 1
    %v1430 = vpop.permute.xlu0 %1429
    %1431 = vrot.lane.b32.xlu0 %v1247, 1
    %v1432 = vpop.permute.xlu0 %1431
    %1433 = vrot.lane.b32.xlu0 %v1251, 1
    %v1434 = vpop.permute.xlu0 %1433
    %1435 = vrot.lane.b32.xlu0 %v1239, 1
    %v1436 = vpop.permute.xlu0 %1435
    %1437 = vrot.lane.b32.xlu0 %v1243, 1
    %v1438 = vpop.permute.xlu0 %1437
    %1439 = vrot.lane.b32.xlu0 %v1249, 1
    %v1440 = vpop.permute.xlu0 %1439
    %1441 = vrot.lane.b32.xlu0 %v1253, 1
    %v1442 = vpop.permute.xlu0 %1441
    %v1443 = vsel %vm378, %v1428, %v1436
    %v1444 = vsel %vm378, %v1430, %v1438
    %v1445 = vsel %vm378, %v1432, %v1440
    %v1446 = vsel %vm378, %v1434, %v1442
    %v1447 = vsel %vm378, %v1436, %v1428
    %v1448 = vsel %vm378, %v1438, %v1430
    %v1449 = vsel %vm378, %v1440, %v1432
    %v1450 = vsel %vm378, %v1442, %v1434
    %v1451 = vsel %vm392, 0.0, %v1447
    %v1452 = vsel %vm392, 0.0, %v1443
    %v1453 = vsel %vm392, 0.0, %v1448
    %v1454 = vsel %vm392, 0.0, %v1444
    %v1455 = vsel %vm392, 0.0, %v1449
    %v1456 = vsel %vm392, 0.0, %v1445
    %v1457 = vsel %vm392, 0.0, %v1450
    %v1458 = vsel %vm392, 0.0, %v1446
    %v1459 = vadd.f32 %v1409, %v1451
    %v1460 = vadd.f32 %v1411, %v1452
    %v1461 = vadd.f32 %v1413, %v1453
    %v1462 = vadd.f32 %v1415, %v1454
    %v1463 = vadd.f32 %v1419, %v1455
    %v1464 = vadd.f32 %v1421, %v1456
    %v1465 = vadd.f32 %v1423, %v1457
    %v1466 = vadd.f32 %v1425, %v1458
    %1467 = vrot.lane.b32.xlu0 %v1316, 127
    %v1468 = vpop.permute.xlu0 %1467
    %1469 = vrot.lane.b32.xlu0 %v1320, 127
    %v1470 = vpop.permute.xlu0 %1469
    %1471 = vrot.lane.b32.xlu0 %v1326, 127
    %v1472 = vpop.permute.xlu0 %1471
    %1473 = vrot.lane.b32.xlu0 %v1330, 127
    %v1474 = vpop.permute.xlu0 %1473
    %1475 = vrot.lane.b32.xlu0 %v1318, 127
    %v1476 = vpop.permute.xlu0 %1475
    %1477 = vrot.lane.b32.xlu0 %v1322, 127
    %v1478 = vpop.permute.xlu0 %1477
    %1479 = vrot.lane.b32.xlu0 %v1328, 127
    %v1480 = vpop.permute.xlu0 %1479
    %1481 = vrot.lane.b32.xlu0 %v1332, 127
    %v1482 = vpop.permute.xlu0 %1481
    %v1483 = vsel %vm425, %v1468, %v1476
    %v1484 = vsel %vm425, %v1470, %v1478
    %v1485 = vsel %vm425, %v1472, %v1480
    %v1486 = vsel %vm425, %v1474, %v1482
    %v1487 = vsel %vm425, %v1476, %v1468
    %v1488 = vsel %vm425, %v1478, %v1470
    %v1489 = vsel %vm425, %v1480, %v1472
    %v1490 = vsel %vm425, %v1482, %v1474
    %v1491 = vsel %vm439, 0.0, %v1483
    %v1492 = vsel %vm439, 0.0, %v1487
    %v1493 = vsel %vm439, 0.0, %v1484
    %v1494 = vsel %vm439, 0.0, %v1488
    %v1495 = vsel %vm439, 0.0, %v1485
    %v1496 = vsel %vm439, 0.0, %v1489
    %v1497 = vsel %vm439, 0.0, %v1486
    %v1498 = vsel %vm439, 0.0, %v1490
    %v1499 = vadd.f32 %v1459, %v1491
    %v1500 = vadd.f32 %v1460, %v1492
    %v1501 = vadd.f32 %v1461, %v1493
    %v1502 = vadd.f32 %v1462, %v1494
    %v1503 = vadd.f32 %v1463, %v1495
    %v1504 = vadd.f32 %v1464, %v1496
    %v1505 = vadd.f32 %v1465, %v1497
    %v1506 = vadd.f32 %v1466, %v1498
    %v1507 = vunpack.c.l.bf16 %v825
    %v1508 = vunpack.c.l.bf16 %v826
    %v1509 = vunpack.c.h.bf16 %v825
    %v1510 = vunpack.c.h.bf16 %v826
    %v1511 = vunpack.c.l.bf16 %v827
    %v1512 = vunpack.c.l.bf16 %v828
    %v1513 = vunpack.c.h.bf16 %v827
    %v1514 = vunpack.c.h.bf16 %v828
    %v1515 = vadd.f32 %v1499, %v1507
    %v1516 = vadd.f32 %v1500, %v1508
    %v1517 = vadd.f32 %v1501, %v1509
    %v1518 = vadd.f32 %v1502, %v1510
    %v1519 = vadd.f32 %v1503, %v1511
    %v1520 = vadd.f32 %v1504, %v1512
    %v1521 = vadd.f32 %v1505, %v1513
    %v1522 = vadd.f32 %v1506, %v1514
    %v1523 = vpack.c.bf16 %v1517, %v1515
    %v1524 = vpack.c.bf16 %v1518, %v1516
    %v1525 = vpack.c.bf16 %v1521, %v1519
    %v1526 = vpack.c.bf16 %v1522, %v1520
    %v1527 = vld [vmem:[%s5] sm:$0xf]
    %v1528 = vld [vmem:[%s5 + $0x4] sm:$0xf]
    %v1529 = vld [vmem:[%s5 + $0x8] sm:$0xf]
    %v1530 = vld [vmem:[%s5 + $0xc] sm:$0xf]
    %v1535 = vunpack.c.l.b16 %v1527
    %v1536 = vunpack.c.l.b16 %v1528
    %v1537 = vunpack.c.l.b16 %v1529
    %v1538 = vunpack.c.l.b16 %v1530
    %v1539 = vpack.c.b16 %v1536, %v1535
    %v1540 = vpack.c.b16 %v1538, %v1537
    %v1542 = vsel %vm130, %v1539, 0
    %v1545 = vsel %vm130, %v1540, 0
    %1547 = vmatprep.subr.bf16.mxu0 %v1524
    %1548 = vmatpush1.bf16.msra.mxu0 %v1523
    %1549 = vmatprep.subr.bf16.mxu0 %v1526
    %1550 = vmatpush1.bf16.msra.mxu0 %v1525
    %1551 = vmatprep.subr.bf16.mxu0 0
    %1552 = vmatpush1.bf16.msra.mxu0 0
    %1553 = vmatprep.subr.bf16.mxu0 0
    %1554 = vmatpush1.bf16.msra.mxu0 0
    %1555 = vmatprep.subr.bf16.mxu0 0
    %1556 = vmatpush1.bf16.msra.mxu0 0
    %1557 = vmatprep.subr.bf16.mxu0 0
    %1558 = vmatpush1.bf16.msra.mxu0 0
    %1559 = vmatprep.subr.bf16.mxu0 0
    %1560 = vmatpush1.bf16.msra.mxu0 0
    %1561 = vmatprep.subr.bf16.mxu0 0
    %1562 = vmatpush1.bf16.msra.mxu0 0
    %1563 = vmatprep.subr.bf16.mxu0 0
    %1564 = vmatpush1.bf16.msra.mxu0 0
    %1565 = vmatprep.subr.bf16.mxu0 0
    %1566 = vmatpush1.bf16.msra.mxu0 0
    %1567 = vmatprep.subr.bf16.mxu0 0
    %1568 = vmatpush1.bf16.msra.mxu0 0
    %1569 = vmatprep.subr.bf16.mxu0 0
    %1570 = vmatpush1.bf16.msra.mxu0 0
    %1571 = vmatprep.subr.bf16.mxu0 0
    %1572 = vmatpush1.bf16.msra.mxu0 0
    %1573 = vmatprep.subr.bf16.mxu0 0
    %1574 = vmatpush1.bf16.msra.mxu0 0
    %1575 = vmatprep.subr.bf16.mxu0 0
    %1576 = vmatpush1.bf16.msra.mxu0 0
    %1577 = vmatprep.subr.bf16.mxu0 0
    %1578 = vmatpush1.bf16.msra.mxu0 0
    %1579 = vmatprep.mubr.bf16.mxu0 0
    %1580 = vmatmul.mubr.bf16.gmra.mrb[0].mxu0 %v1542
    %v1581 = vpop.f32.mrb[0].mxu0
    %v1582 = vadd.f32 0.0, %v1581
    %v1583 = vpop.f32.mrb[0].mxu0
    %v1584 = vadd.f32 0.0, %v1583
    %v1585 = vpop.f32.mrb[0].mxu0
    %v1586 = vadd.f32 0.0, %v1585
    %v1587 = vpop.f32.mrb[0].mxu0
    %v1588 = vadd.f32 0.0, %v1587
    %1589 = vmatprep.mubr.bf16.mxu0 0
    %1590 = vmatmul.mubr.bf16.gmra.mrb[0].mxu0 %v1545
    %v1591 = vpop.f32.mrb[0].mxu0
    %v1592 = vadd.f32 0.0, %v1591
    %v1593 = vpop.f32.mrb[0].mxu0
    %v1594 = vadd.f32 0.0, %v1593
    %v1595 = vpop.f32.mrb[0].mxu0
    %v1596 = vadd.f32 0.0, %v1595
    %v1597 = vpop.f32.mrb[0].mxu0
    %v1598 = vadd.f32 0.0, %v1597
    %1599 = vdwg.mxu0
    %s1600 = scalar_lea.vmem %s5, 16
    %v1601 = vld [vmem:[%s1600] sm:$0xf]
    %v1602 = vld [vmem:[%s1600 + $0x4] sm:$0xf]
    %v1603 = vld [vmem:[%s1600 + $0x8] sm:$0xf]
    %v1604 = vld [vmem:[%s1600 + $0xc] sm:$0xf]
    %s1605 = scalar_lea.vmem %s5, 32
    %v1606 = vld [vmem:[%s1605] sm:$0xf]
    %v1607 = vld [vmem:[%s1605 + $0x4] sm:$0xf]
    %v1608 = vld [vmem:[%s1605 + $0x8] sm:$0xf]
    %v1609 = vld [vmem:[%s1605 + $0xc] sm:$0xf]
    %v1614 = vunpack.c.l.b16 %v1606
    %v1615 = vunpack.c.l.b16 %v1607
    %v1616 = vunpack.c.l.b16 %v1608
    %v1617 = vunpack.c.l.b16 %v1609
    %v1618 = vpack.c.b16 %v1615, %v1614
    %v1619 = vpack.c.b16 %v1617, %v1616
    %v1621 = vsel %vm130, %v1618, 0
    %v1624 = vsel %vm130, %v1619, 0
    %1626 = vmatprep.subr.bf16.mxu0 %v1524
    %1627 = vmatpush1.bf16.msra.mxu0 %v1523
    %1628 = vmatprep.subr.bf16.mxu0 %v1526
    %1629 = vmatpush1.bf16.msra.mxu0 %v1525
    %1630 = vmatprep.subr.bf16.mxu0 0
    %1631 = vmatpush1.bf16.msra.mxu0 0
    %1632 = vmatprep.subr.bf16.mxu0 0
    %1633 = vmatpush1.bf16.msra.mxu0 0
    %1634 = vmatprep.subr.bf16.mxu0 0
    %1635 = vmatpush1.bf16.msra.mxu0 0
    %1636 = vmatprep.subr.bf16.mxu0 0
    %1637 = vmatpush1.bf16.msra.mxu0 0
    %1638 = vmatprep.subr.bf16.mxu0 0
    %1639 = vmatpush1.bf16.msra.mxu0 0
    %1640 = vmatprep.subr.bf16.mxu0 0
    %1641 = vmatpush1.bf16.msra.mxu0 0
    %1642 = vmatprep.subr.bf16.mxu0 0
    %1643 = vmatpush1.bf16.msra.mxu0 0
    %1644 = vmatprep.subr.bf16.mxu0 0
    %1645 = vmatpush1.bf16.msra.mxu0 0
    %1646 = vmatprep.subr.bf16.mxu0 0
    %1647 = vmatpush1.bf16.msra.mxu0 0
    %1648 = vmatprep.subr.bf16.mxu0 0
    %1649 = vmatpush1.bf16.msra.mxu0 0
    %1650 = vmatprep.subr.bf16.mxu0 0
    %1651 = vmatpush1.bf16.msra.mxu0 0
    %1652 = vmatprep.subr.bf16.mxu0 0
    %1653 = vmatpush1.bf16.msra.mxu0 0
    %1654 = vmatprep.subr.bf16.mxu0 0
    %1655 = vmatpush1.bf16.msra.mxu0 0
    %1656 = vmatprep.subr.bf16.mxu0 0
    %1657 = vmatpush1.bf16.msra.mxu0 0
    %1658 = vmatprep.mubr.bf16.mxu0 0
    %1659 = vmatmul.mubr.bf16.gmra.mrb[0].mxu0 %v1621
    %v1660 = vpop.f32.mrb[0].mxu0
    %v1661 = vadd.f32 0.0, %v1660
    %v1662 = vpop.f32.mrb[0].mxu0
    %v1663 = vadd.f32 0.0, %v1662
    %v1664 = vpop.f32.mrb[0].mxu0
    %v1665 = vadd.f32 0.0, %v1664
    %v1666 = vpop.f32.mrb[0].mxu0
    %v1667 = vadd.f32 0.0, %v1666
    %1668 = vmatprep.mubr.bf16.mxu0 0
    %1669 = vmatmul.mubr.bf16.gmra.mrb[0].mxu0 %v1624
    %v1670 = vpop.f32.mrb[0].mxu0
    %v1671 = vadd.f32 0.0, %v1670
    %v1672 = vpop.f32.mrb[0].mxu0
    %v1673 = vadd.f32 0.0, %v1672
    %v1674 = vpop.f32.mrb[0].mxu0
    %v1675 = vadd.f32 0.0, %v1674
    %v1676 = vpop.f32.mrb[0].mxu0
    %v1677 = vadd.f32 0.0, %v1676
    %1678 = vdwg.mxu0
    %v1679 = vld [vmem:[%s12] sm:$0xff]
    %v1680 = vld [vmem:[%s12 + $0x8] sm:$0xff]
    %v1681 = vld [vmem:[%s12 + $0x10] sm:$0xff]
    %v1682 = vld [vmem:[%s12 + $0x18] sm:$0xff]
    %1684 = vset.pattern.permute.xlu0 0
    %1685 = vperm.xlu0 %1684, %v1679
    %v1686 = vpop.permute.xlu0 %1685
    %1689 = vset.pattern.permute.xlu0 0
    %1690 = vperm.xlu0 %1689, %v1680
    %v1691 = vpop.permute.xlu0 %1690
    %1694 = vset.pattern.permute.xlu0 0
    %1695 = vperm.xlu0 %1694, %v1681
    %v1696 = vpop.permute.xlu0 %1695
    %1699 = vset.pattern.permute.xlu0 0
    %1700 = vperm.xlu0 %1699, %v1682
    %v1701 = vpop.permute.xlu0 %1700
    %v1707 = vunpack.c.l.b16 %v1601
    %v1708 = vunpack.c.l.b16 %v1602
    %v1709 = vunpack.c.l.b16 %v1603
    %v1710 = vunpack.c.l.b16 %v1604
    %v1711 = vpack.c.b16 %v1708, %v1707
    %v1712 = vpack.c.b16 %v1710, %v1709
    %v1714 = vsel %vm130, %v1711, 0
    %v1717 = vsel %vm130, %v1712, 0
    %1719 = vmatprep.subr.bf16.mxu0 %v1524
    %1720 = vmatpush1.bf16.msra.mxu0 %v1523
    %1721 = vmatprep.subr.bf16.mxu0 %v1526
    %1722 = vmatpush1.bf16.msra.mxu0 %v1525
    %1723 = vmatprep.subr.bf16.mxu0 0
    %1724 = vmatpush1.bf16.msra.mxu0 0
    %1725 = vmatprep.subr.bf16.mxu0 0
    %1726 = vmatpush1.bf16.msra.mxu0 0
    %1727 = vmatprep.subr.bf16.mxu0 0
    %1728 = vmatpush1.bf16.msra.mxu0 0
    %1729 = vmatprep.subr.bf16.mxu0 0
    %1730 = vmatpush1.bf16.msra.mxu0 0
    %1731 = vmatprep.subr.bf16.mxu0 0
    %1732 = vmatpush1.bf16.msra.mxu0 0
    %1733 = vmatprep.subr.bf16.mxu0 0
    %1734 = vmatpush1.bf16.msra.mxu0 0
    %1735 = vmatprep.subr.bf16.mxu0 0
    %1736 = vmatpush1.bf16.msra.mxu0 0
    %1737 = vmatprep.subr.bf16.mxu0 0
    %1738 = vmatpush1.bf16.msra.mxu0 0
    %1739 = vmatprep.subr.bf16.mxu0 0
    %1740 = vmatpush1.bf16.msra.mxu0 0
    %1741 = vmatprep.subr.bf16.mxu0 0
    %1742 = vmatpush1.bf16.msra.mxu0 0
    %1743 = vmatprep.subr.bf16.mxu0 0
    %1744 = vmatpush1.bf16.msra.mxu0 0
    %1745 = vmatprep.subr.bf16.mxu0 0
    %1746 = vmatpush1.bf16.msra.mxu0 0
    %1747 = vmatprep.subr.bf16.mxu0 0
    %1748 = vmatpush1.bf16.msra.mxu0 0
    %1749 = vmatprep.subr.bf16.mxu0 0
    %1750 = vmatpush1.bf16.msra.mxu0 0
    %1751 = vmatprep.mubr.bf16.mxu0 0
    %1752 = vmatmul.mubr.bf16.gmra.mrb[0].mxu0 %v1714
    %v1753 = vpop.f32.mrb[0].mxu0
    %v1754 = vadd.f32 %v1686, %v1753
    %v1755 = vpop.f32.mrb[0].mxu0
    %v1756 = vadd.f32 %v1686, %v1755
    %v1757 = vpop.f32.mrb[0].mxu0
    %v1758 = vadd.f32 %v1691, %v1757
    %v1759 = vpop.f32.mrb[0].mxu0
    %v1760 = vadd.f32 %v1691, %v1759
    %1761 = vmatprep.mubr.bf16.mxu0 0
    %1762 = vmatmul.mubr.bf16.gmra.mrb[0].mxu0 %v1717
    %v1763 = vpop.f32.mrb[0].mxu0
    %v1764 = vadd.f32 %v1696, %v1763
    %v1765 = vpop.f32.mrb[0].mxu0
    %v1766 = vadd.f32 %v1696, %v1765
    %v1767 = vpop.f32.mrb[0].mxu0
    %v1768 = vadd.f32 %v1701, %v1767
    %v1769 = vpop.f32.mrb[0].mxu0
    %v1770 = vadd.f32 %v1701, %v1769
    %1771 = vdwg.mxu0
    %1772 = vrot.lane.b32.xlu0 %v1582, 1
    %v1773 = vpop.permute.xlu0 %1772
    %1774 = vrot.lane.b32.xlu0 %v1586, 1
    %v1775 = vpop.permute.xlu0 %1774
    %1776 = vrot.lane.b32.xlu0 %v1592, 1
    %v1777 = vpop.permute.xlu0 %1776
    %1778 = vrot.lane.b32.xlu0 %v1596, 1
    %v1779 = vpop.permute.xlu0 %1778
    %1780 = vrot.lane.b32.xlu0 %v1584, 1
    %v1781 = vpop.permute.xlu0 %1780
    %1782 = vrot.lane.b32.xlu0 %v1588, 1
    %v1783 = vpop.permute.xlu0 %1782
    %1784 = vrot.lane.b32.xlu0 %v1594, 1
    %v1785 = vpop.permute.xlu0 %1784
    %1786 = vrot.lane.b32.xlu0 %v1598, 1
    %v1787 = vpop.permute.xlu0 %1786
    %v1788 = vsel %vm378, %v1773, %v1781
    %v1789 = vsel %vm378, %v1775, %v1783
    %v1790 = vsel %vm378, %v1777, %v1785
    %v1791 = vsel %vm378, %v1779, %v1787
    %v1792 = vsel %vm378, %v1781, %v1773
    %v1793 = vsel %vm378, %v1783, %v1775
    %v1794 = vsel %vm378, %v1785, %v1777
    %v1795 = vsel %vm378, %v1787, %v1779
    %v1796 = vsel %vm392, 0.0, %v1792
    %v1797 = vsel %vm392, 0.0, %v1788
    %v1798 = vsel %vm392, 0.0, %v1793
    %v1799 = vsel %vm392, 0.0, %v1789
    %v1800 = vsel %vm392, 0.0, %v1794
    %v1801 = vsel %vm392, 0.0, %v1790
    %v1802 = vsel %vm392, 0.0, %v1795
    %v1803 = vsel %vm392, 0.0, %v1791
    %v1804 = vadd.f32 %v1754, %v1796
    %v1805 = vadd.f32 %v1756, %v1797
    %v1806 = vadd.f32 %v1758, %v1798
    %v1807 = vadd.f32 %v1760, %v1799
    %v1808 = vadd.f32 %v1764, %v1800
    %v1809 = vadd.f32 %v1766, %v1801
    %v1810 = vadd.f32 %v1768, %v1802
    %v1811 = vadd.f32 %v1770, %v1803
    %1812 = vrot.lane.b32.xlu0 %v1661, 127
    %v1813 = vpop.permute.xlu0 %1812
    %1814 = vrot.lane.b32.xlu0 %v1665, 127
    %v1815 = vpop.permute.xlu0 %1814
    %1816 = vrot.lane.b32.xlu0 %v1671, 127
    %v1817 = vpop.permute.xlu0 %1816
    %1818 = vrot.lane.b32.xlu0 %v1675, 127
    %v1819 = vpop.permute.xlu0 %1818
    %1820 = vrot.lane.b32.xlu0 %v1663, 127
    %v1821 = vpop.permute.xlu0 %1820
    %1822 = vrot.lane.b32.xlu0 %v1667, 127
    %v1823 = vpop.permute.xlu0 %1822
    %1824 = vrot.lane.b32.xlu0 %v1673, 127
    %v1825 = vpop.permute.xlu0 %1824
    %1826 = vrot.lane.b32.xlu0 %v1677, 127
    %v1827 = vpop.permute.xlu0 %1826
    %v1828 = vsel %vm425, %v1813, %v1821
    %v1829 = vsel %vm425, %v1815, %v1823
    %v1830 = vsel %vm425, %v1817, %v1825
    %v1831 = vsel %vm425, %v1819, %v1827
    %v1832 = vsel %vm425, %v1821, %v1813
    %v1833 = vsel %vm425, %v1823, %v1815
    %v1834 = vsel %vm425, %v1825, %v1817
    %v1835 = vsel %vm425, %v1827, %v1819
    %v1836 = vsel %vm439, 0.0, %v1828
    %v1837 = vsel %vm439, 0.0, %v1832
    %v1838 = vsel %vm439, 0.0, %v1829
    %v1839 = vsel %vm439, 0.0, %v1833
    %v1840 = vsel %vm439, 0.0, %v1830
    %v1841 = vsel %vm439, 0.0, %v1834
    %v1842 = vsel %vm439, 0.0, %v1831
    %v1843 = vsel %vm439, 0.0, %v1835
    %v1844 = vadd.f32 %v1804, %v1836
    %v1845 = vadd.f32 %v1805, %v1837
    %v1846 = vadd.f32 %v1806, %v1838
    %v1847 = vadd.f32 %v1807, %v1839
    %v1848 = vadd.f32 %v1808, %v1840
    %v1849 = vadd.f32 %v1809, %v1841
    %v1850 = vadd.f32 %v1810, %v1842
    %v1851 = vadd.f32 %v1811, %v1843
    %vm1852 = vcmp.gt.f32.partialorder %v1844, 0.0
    %vm1853 = vcmp.gt.f32.partialorder %v1845, 0.0
    %vm1854 = vcmp.gt.f32.partialorder %v1846, 0.0
    %vm1855 = vcmp.gt.f32.partialorder %v1847, 0.0
    %vm1856 = vcmp.gt.f32.partialorder %v1848, 0.0
    %vm1857 = vcmp.gt.f32.partialorder %v1849, 0.0
    %vm1858 = vcmp.gt.f32.partialorder %v1850, 0.0
    %vm1859 = vcmp.gt.f32.partialorder %v1851, 0.0
    %v1860 = vmul.f32 %v1844, 0.2
    %v1861 = vmul.f32 %v1845, 0.2
    %v1862 = vmul.f32 %v1846, 0.2
    %v1863 = vmul.f32 %v1847, 0.2
    %v1864 = vmul.f32 %v1848, 0.2
    %v1865 = vmul.f32 %v1849, 0.2
    %v1866 = vmul.f32 %v1850, 0.2
    %v1867 = vmul.f32 %v1851, 0.2
    %v1868 = vsel %vm1852, %v1844, %v1860
    %v1869 = vsel %vm1853, %v1845, %v1861
    %v1870 = vsel %vm1854, %v1846, %v1862
    %v1871 = vsel %vm1855, %v1847, %v1863
    %v1872 = vsel %vm1856, %v1848, %v1864
    %v1873 = vsel %vm1857, %v1849, %v1865
    %v1874 = vsel %vm1858, %v1850, %v1866
    %v1875 = vsel %vm1859, %v1851, %v1867
    %v1876 = vpack.c.bf16 %v1870, %v1868
    %v1877 = vpack.c.bf16 %v1871, %v1869
    %v1878 = vpack.c.bf16 %v1874, %v1872
    %v1879 = vpack.c.bf16 %v1875, %v1873
    %v1880 = vld [vmem:[#allocation4] sm:$0xf]
    %v1881 = vld [vmem:[#allocation4 + $0x4] sm:$0xf]
    %v1884 = vunpack.c.l.b16 %v1880
    %v1885 = vunpack.c.l.b16 %v1881
    %v1886 = vpack.c.b16 %v1885, %v1884
    %v1888 = vsel %vm130, %v1886, 0
    %1890 = vmatprep.subr.bf16.mxu0 %v1877
    %1891 = vmatpush1.bf16.msra.mxu0 %v1876
    %1892 = vmatprep.subr.bf16.mxu0 %v1879
    %1893 = vmatpush1.bf16.msra.mxu0 %v1878
    %1894 = vmatprep.subr.bf16.mxu0 0
    %1895 = vmatpush1.bf16.msra.mxu0 0
    %1896 = vmatprep.subr.bf16.mxu0 0
    %1897 = vmatpush1.bf16.msra.mxu0 0
    %1898 = vmatprep.subr.bf16.mxu0 0
    %1899 = vmatpush1.bf16.msra.mxu0 0
    %1900 = vmatprep.subr.bf16.mxu0 0
    %1901 = vmatpush1.bf16.msra.mxu0 0
    %1902 = vmatprep.subr.bf16.mxu0 0
    %1903 = vmatpush1.bf16.msra.mxu0 0
    %1904 = vmatprep.subr.bf16.mxu0 0
    %1905 = vmatpush1.bf16.msra.mxu0 0
    %1906 = vmatprep.subr.bf16.mxu0 0
    %1907 = vmatpush1.bf16.msra.mxu0 0
    %1908 = vmatprep.subr.bf16.mxu0 0
    %1909 = vmatpush1.bf16.msra.mxu0 0
    %1910 = vmatprep.subr.bf16.mxu0 0
    %1911 = vmatpush1.bf16.msra.mxu0 0
    %1912 = vmatprep.subr.bf16.mxu0 0
    %1913 = vmatpush1.bf16.msra.mxu0 0
    %1914 = vmatprep.subr.bf16.mxu0 0
    %1915 = vmatpush1.bf16.msra.mxu0 0
    %1916 = vmatprep.subr.bf16.mxu0 0
    %1917 = vmatpush1.bf16.msra.mxu0 0
    %1918 = vmatprep.subr.bf16.mxu0 0
    %1919 = vmatpush1.bf16.msra.mxu0 0
    %1920 = vmatprep.subr.bf16.mxu0 0
    %1921 = vmatpush1.bf16.msra.mxu0 0
    %1922 = vmatprep.mubr.bf16.mxu0 0
    %1923 = vmatmul.mubr.bf16.gmra.mrb[0].mxu0 %v1888
    %v1924 = vpop.f32.mrb[0].mxu0
    %v1925 = vadd.f32 0.0, %v1924
    %v1926 = vpop.f32.mrb[0].mxu0
    %v1927 = vadd.f32 0.0, %v1926
    %v1928 = vpop.f32.mrb[0].mxu0
    %v1929 = vadd.f32 0.0, %v1928
    %v1930 = vpop.f32.mrb[0].mxu0
    %v1931 = vadd.f32 0.0, %v1930
    %1932 = vdwg.mxu0
    %s1933 = scalar_lea.vmem [#allocation4], 8
    %v1934 = vld [vmem:[%s1933] sm:$0xf]
    %v1935 = vld [vmem:[%s1933 + $0x4] sm:$0xf]
    %s1936 = scalar_lea.vmem [#allocation4], 16
    %v1937 = vld [vmem:[%s1936] sm:$0xf]
    %v1938 = vld [vmem:[%s1936 + $0x4] sm:$0xf]
    %v1941 = vunpack.c.l.b16 %v1937
    %v1942 = vunpack.c.l.b16 %v1938
    %v1943 = vpack.c.b16 %v1942, %v1941
    %v1945 = vsel %vm130, %v1943, 0
    %1947 = vmatprep.subr.bf16.mxu0 %v1877
    %1948 = vmatpush1.bf16.msra.mxu0 %v1876
    %1949 = vmatprep.subr.bf16.mxu0 %v1879
    %1950 = vmatpush1.bf16.msra.mxu0 %v1878
    %1951 = vmatprep.subr.bf16.mxu0 0
    %1952 = vmatpush1.bf16.msra.mxu0 0
    %1953 = vmatprep.subr.bf16.mxu0 0
    %1954 = vmatpush1.bf16.msra.mxu0 0
    %1955 = vmatprep.subr.bf16.mxu0 0
    %1956 = vmatpush1.bf16.msra.mxu0 0
    %1957 = vmatprep.subr.bf16.mxu0 0
    %1958 = vmatpush1.bf16.msra.mxu0 0
    %1959 = vmatprep.subr.bf16.mxu0 0
    %1960 = vmatpush1.bf16.msra.mxu0 0
    %1961 = vmatprep.subr.bf16.mxu0 0
    %1962 = vmatpush1.bf16.msra.mxu0 0
    %1963 = vmatprep.subr.bf16.mxu0 0
    %1964 = vmatpush1.bf16.msra.mxu0 0
    %1965 = vmatprep.subr.bf16.mxu0 0
    %1966 = vmatpush1.bf16.msra.mxu0 0
    %1967 = vmatprep.subr.bf16.mxu0 0
    %1968 = vmatpush1.bf16.msra.mxu0 0
    %1969 = vmatprep.subr.bf16.mxu0 0
    %1970 = vmatpush1.bf16.msra.mxu0 0
    %1971 = vmatprep.subr.bf16.mxu0 0
    %1972 = vmatpush1.bf16.msra.mxu0 0
    %1973 = vmatprep.subr.bf16.mxu0 0
    %1974 = vmatpush1.bf16.msra.mxu0 0
    %1975 = vmatprep.subr.bf16.mxu0 0
    %1976 = vmatpush1.bf16.msra.mxu0 0
    %1977 = vmatprep.subr.bf16.mxu0 0
    %1978 = vmatpush1.bf16.msra.mxu0 0
    %1979 = vmatprep.mubr.bf16.mxu0 0
    %1980 = vmatmul.mubr.bf16.gmra.mrb[0].mxu0 %v1945
    %v1981 = vpop.f32.mrb[0].mxu0
    %v1982 = vadd.f32 0.0, %v1981
    %v1983 = vpop.f32.mrb[0].mxu0
    %v1984 = vadd.f32 0.0, %v1983
    %v1985 = vpop.f32.mrb[0].mxu0
    %v1986 = vadd.f32 0.0, %v1985
    %v1987 = vpop.f32.mrb[0].mxu0
    %v1988 = vadd.f32 0.0, %v1987
    %1989 = vdwg.mxu0
    %v1990 = vld [vmem:[%s13] sm:$0xff]
    %v1991 = vld [vmem:[%s13 + $0x8] sm:$0xff]
    %1993 = vset.pattern.permute.xlu0 0
    %1994 = vperm.xlu0 %1993, %v1990
    %v1995 = vpop.permute.xlu0 %1994
    %1998 = vset.pattern.permute.xlu0 0
    %1999 = vperm.xlu0 %1998, %v1991
    %v2000 = vpop.permute.xlu0 %1999
    %v2004 = vunpack.c.l.b16 %v1934
    %v2005 = vunpack.c.l.b16 %v1935
    %v2006 = vpack.c.b16 %v2005, %v2004
    %v2008 = vsel %vm130, %v2006, 0
    %2010 = vmatprep.subr.bf16.mxu0 %v1877
    %2011 = vmatpush1.bf16.msra.mxu0 %v1876
    %2012 = vmatprep.subr.bf16.mxu0 %v1879
    %2013 = vmatpush1.bf16.msra.mxu0 %v1878
    %2014 = vmatprep.subr.bf16.mxu0 0
    %2015 = vmatpush1.bf16.msra.mxu0 0
    %2016 = vmatprep.subr.bf16.mxu0 0
    %2017 = vmatpush1.bf16.msra.mxu0 0
    %2018 = vmatprep.subr.bf16.mxu0 0
    %2019 = vmatpush1.bf16.msra.mxu0 0
    %2020 = vmatprep.subr.bf16.mxu0 0
    %2021 = vmatpush1.bf16.msra.mxu0 0
    %2022 = vmatprep.subr.bf16.mxu0 0
    %2023 = vmatpush1.bf16.msra.mxu0 0
    %2024 = vmatprep.subr.bf16.mxu0 0
    %2025 = vmatpush1.bf16.msra.mxu0 0
    %2026 = vmatprep.subr.bf16.mxu0 0
    %2027 = vmatpush1.bf16.msra.mxu0 0
    %2028 = vmatprep.subr.bf16.mxu0 0
    %2029 = vmatpush1.bf16.msra.mxu0 0
    %2030 = vmatprep.subr.bf16.mxu0 0
    %2031 = vmatpush1.bf16.msra.mxu0 0
    %2032 = vmatprep.subr.bf16.mxu0 0
    %2033 = vmatpush1.bf16.msra.mxu0 0
    %2034 = vmatprep.subr.bf16.mxu0 0
    %2035 = vmatpush1.bf16.msra.mxu0 0
    %2036 = vmatprep.subr.bf16.mxu0 0
    %2037 = vmatpush1.bf16.msra.mxu0 0
    %2038 = vmatprep.subr.bf16.mxu0 0
    %2039 = vmatpush1.bf16.msra.mxu0 0
    %2040 = vmatprep.subr.bf16.mxu0 0
    %2041 = vmatpush1.bf16.msra.mxu0 0
    %2042 = vmatprep.mubr.bf16.mxu0 0
    %2043 = vmatmul.mubr.bf16.gmra.mrb[0].mxu0 %v2008
    %v2044 = vpop.f32.mrb[0].mxu0
    %v2045 = vadd.f32 %v1995, %v2044
    %v2046 = vpop.f32.mrb[0].mxu0
    %v2047 = vadd.f32 %v1995, %v2046
    %v2048 = vpop.f32.mrb[0].mxu0
    %v2049 = vadd.f32 %v2000, %v2048
    %v2050 = vpop.f32.mrb[0].mxu0
    %v2051 = vadd.f32 %v2000, %v2050
    %2052 = vdwg.mxu0
    %2053 = vrot.lane.b32.xlu0 %v1925, 1
    %v2054 = vpop.permute.xlu0 %2053
    %2055 = vrot.lane.b32.xlu0 %v1929, 1
    %v2056 = vpop.permute.xlu0 %2055
    %2057 = vrot.lane.b32.xlu0 %v1927, 1
    %v2058 = vpop.permute.xlu0 %2057
    %2059 = vrot.lane.b32.xlu0 %v1931, 1
    %v2060 = vpop.permute.xlu0 %2059
    %v2061 = vsel %vm378, %v2054, %v2058
    %v2062 = vsel %vm378, %v2056, %v2060
    %v2063 = vsel %vm378, %v2058, %v2054
    %v2064 = vsel %vm378, %v2060, %v2056
    %v2065 = vsel %vm392, 0.0, %v2063
    %v2066 = vsel %vm392, 0.0, %v2061
    %v2067 = vsel %vm392, 0.0, %v2064
    %v2068 = vsel %vm392, 0.0, %v2062
    %v2069 = vadd.f32 %v2045, %v2065
    %v2070 = vadd.f32 %v2047, %v2066
    %v2071 = vadd.f32 %v2049, %v2067
    %v2072 = vadd.f32 %v2051, %v2068
    %2073 = vrot.lane.b32.xlu0 %v1982, 127
    %v2074 = vpop.permute.xlu0 %2073
    %2075 = vrot.lane.b32.xlu0 %v1986, 127
    %v2076 = vpop.permute.xlu0 %2075
    %2077 = vrot.lane.b32.xlu0 %v1984, 127
    %v2078 = vpop.permute.xlu0 %2077
    %2079 = vrot.lane.b32.xlu0 %v1988, 127
    %v2080 = vpop.permute.xlu0 %2079
    %v2081 = vsel %vm425, %v2074, %v2078
    %v2082 = vsel %vm425, %v2076, %v2080
    %v2083 = vsel %vm425, %v2078, %v2074
    %v2084 = vsel %vm425, %v2080, %v2076
    %v2085 = vsel %vm439, 0.0, %v2081
    %v2086 = vsel %vm439, 0.0, %v2083
    %v2087 = vsel %vm439, 0.0, %v2082
    %v2088 = vsel %vm439, 0.0, %v2084
    %v2089 = vadd.f32 %v2069, %v2085
    %v2090 = vadd.f32 %v2070, %v2086
    %v2091 = vadd.f32 %v2071, %v2087
    %v2092 = vadd.f32 %v2072, %v2088
    %vm2093 = vcmp.gt.f32.partialorder %v2089, 0.0
    %vm2094 = vcmp.gt.f32.partialorder %v2090, 0.0
    %vm2095 = vcmp.gt.f32.partialorder %v2091, 0.0
    %vm2096 = vcmp.gt.f32.partialorder %v2092, 0.0
    %v2097 = vmul.f32 %v2089, 0.2
    %v2098 = vmul.f32 %v2090, 0.2
    %v2099 = vmul.f32 %v2091, 0.2
    %v2100 = vmul.f32 %v2092, 0.2
    %v2101 = vsel %vm2093, %v2089, %v2097
    %v2102 = vsel %vm2094, %v2090, %v2098
    %v2103 = vsel %vm2095, %v2091, %v2099
    %v2104 = vsel %vm2096, %v2092, %v2100
    %v2105 = vpack.c.bf16 %v2103, %v2101
    %v2106 = vpack.c.bf16 %v2104, %v2102
    %v2107 = vld [vmem:[%s7] sm:$0xf]
    %v2108 = vld [vmem:[%s7 + $0x4] sm:$0xf]
    %v2111 = vunpack.c.l.b16 %v2107
    %v2112 = vunpack.c.l.b16 %v2108
    %v2113 = vpack.c.b16 %v2112, %v2111
    %vm2114 = vcmask 130048
    %v2116 = vsel %vm2114, %v2113, 0
    %2118 = vmatprep.subr.bf16.mxu0 %v2106
    %2119 = vmatpush1.bf16.msra.mxu0 %v2105
    %2120 = vmatprep.subr.bf16.mxu0 0
    %2121 = vmatpush1.bf16.msra.mxu0 0
    %2122 = vmatprep.subr.bf16.mxu0 0
    %2123 = vmatpush1.bf16.msra.mxu0 0
    %2124 = vmatprep.subr.bf16.mxu0 0
    %2125 = vmatpush1.bf16.msra.mxu0 0
    %2126 = vmatprep.subr.bf16.mxu0 0
    %2127 = vmatpush1.bf16.msra.mxu0 0
    %2128 = vmatprep.subr.bf16.mxu0 0
    %2129 = vmatpush1.bf16.msra.mxu0 0
    %2130 = vmatprep.subr.bf16.mxu0 0
    %2131 = vmatpush1.bf16.msra.mxu0 0
    %2132 = vmatprep.subr.bf16.mxu0 0
    %2133 = vmatpush1.bf16.msra.mxu0 0
    %2134 = vmatprep.subr.bf16.mxu0 0
    %2135 = vmatpush1.bf16.msra.mxu0 0
    %2136 = vmatprep.subr.bf16.mxu0 0
    %2137 = vmatpush1.bf16.msra.mxu0 0
    %2138 = vmatprep.subr.bf16.mxu0 0
    %2139 = vmatpush1.bf16.msra.mxu0 0
    %2140 = vmatprep.subr.bf16.mxu0 0
    %2141 = vmatpush1.bf16.msra.mxu0 0
    %2142 = vmatprep.subr.bf16.mxu0 0
    %2143 = vmatpush1.bf16.msra.mxu0 0
    %2144 = vmatprep.subr.bf16.mxu0 0
    %2145 = vmatpush1.bf16.msra.mxu0 0
    %2146 = vmatprep.subr.bf16.mxu0 0
    %2147 = vmatpush1.bf16.msra.mxu0 0
    %2148 = vmatprep.subr.bf16.mxu0 0
    %2149 = vmatpush1.bf16.msra.mxu0 0
    %2150 = vmatprep.mubr.bf16.mxu0 0
    %2151 = vmatmul.mubr.bf16.gmra.mrb[0].mxu0 %v2116
    %v2152 = vpop.f32.mrb[0].mxu0
    %v2153 = vadd.f32 0.0, %v2152
    %v2154 = vpop.f32.mrb[0].mxu0
    %v2155 = vadd.f32 0.0, %v2154
    %v2156 = vpop.f32.mrb[0].mxu0
    %v2157 = vadd.f32 0.0, %v2156
    %v2158 = vpop.f32.mrb[0].mxu0
    %v2159 = vadd.f32 0.0, %v2158
    %2160 = vdwg.mxu0
    %s2161 = scalar_lea.vmem %s7, 8
    %v2162 = vld [vmem:[%s2161] sm:$0xf]
    %v2163 = vld [vmem:[%s2161 + $0x4] sm:$0xf]
    %s2164 = scalar_lea.vmem %s7, 16
    %v2165 = vld [vmem:[%s2164] sm:$0xf]
    %v2166 = vld [vmem:[%s2164 + $0x4] sm:$0xf]
    %v2169 = vunpack.c.l.b16 %v2165
    %v2170 = vunpack.c.l.b16 %v2166
    %v2171 = vpack.c.b16 %v2170, %v2169
    %v2173 = vsel %vm2114, %v2171, 0
    %2175 = vmatprep.subr.bf16.mxu0 %v2106
    %2176 = vmatpush1.bf16.msra.mxu0 %v2105
    %2177 = vmatprep.subr.bf16.mxu0 0
    %2178 = vmatpush1.bf16.msra.mxu0 0
    %2179 = vmatprep.subr.bf16.mxu0 0
    %2180 = vmatpush1.bf16.msra.mxu0 0
    %2181 = vmatprep.subr.bf16.mxu0 0
    %2182 = vmatpush1.bf16.msra.mxu0 0
    %2183 = vmatprep.subr.bf16.mxu0 0
    %2184 = vmatpush1.bf16.msra.mxu0 0
    %2185 = vmatprep.subr.bf16.mxu0 0
    %2186 = vmatpush1.bf16.msra.mxu0 0
    %2187 = vmatprep.subr.bf16.mxu0 0
    %2188 = vmatpush1.bf16.msra.mxu0 0
    %2189 = vmatprep.subr.bf16.mxu0 0
    %2190 = vmatpush1.bf16.msra.mxu0 0
    %2191 = vmatprep.subr.bf16.mxu0 0
    %2192 = vmatpush1.bf16.msra.mxu0 0
    %2193 = vmatprep.subr.bf16.mxu0 0
    %2194 = vmatpush1.bf16.msra.mxu0 0
    %2195 = vmatprep.subr.bf16.mxu0 0
    %2196 = vmatpush1.bf16.msra.mxu0 0
    %2197 = vmatprep.subr.bf16.mxu0 0
    %2198 = vmatpush1.bf16.msra.mxu0 0
    %2199 = vmatprep.subr.bf16.mxu0 0
    %2200 = vmatpush1.bf16.msra.mxu0 0
    %2201 = vmatprep.subr.bf16.mxu0 0
    %2202 = vmatpush1.bf16.msra.mxu0 0
    %2203 = vmatprep.subr.bf16.mxu0 0
    %2204 = vmatpush1.bf16.msra.mxu0 0
    %2205 = vmatprep.subr.bf16.mxu0 0
    %2206 = vmatpush1.bf16.msra.mxu0 0
    %2207 = vmatprep.mubr.bf16.mxu0 0
    %2208 = vmatmul.mubr.bf16.gmra.mrb[0].mxu0 %v2173
    %v2209 = vpop.f32.mrb[0].mxu0
    %v2210 = vadd.f32 0.0, %v2209
    %v2211 = vpop.f32.mrb[0].mxu0
    %v2212 = vadd.f32 0.0, %v2211
    %v2213 = vpop.f32.mrb[0].mxu0
    %v2214 = vadd.f32 0.0, %v2213
    %v2215 = vpop.f32.mrb[0].mxu0
    %v2216 = vadd.f32 0.0, %v2215
    %2217 = vdwg.mxu0
    %v2218 = vld [vmem:[%s14] sm:$0xff]
    %v2219 = vld [vmem:[%s14 + $0x8] sm:$0xff]
    %2221 = vset.pattern.permute.xlu0 0
    %2222 = vperm.xlu0 %2221, %v2218
    %v2223 = vpop.permute.xlu0 %2222
    %2226 = vset.pattern.permute.xlu0 0
    %2227 = vperm.xlu0 %2226, %v2219
    %v2228 = vpop.permute.xlu0 %2227
    %v2232 = vunpack.c.l.b16 %v2162
    %v2233 = vunpack.c.l.b16 %v2163
    %v2234 = vpack.c.b16 %v2233, %v2232
    %v2236 = vsel %vm2114, %v2234, 0
    %2238 = vmatprep.subr.bf16.mxu0 %v2106
    %2239 = vmatpush1.bf16.msra.mxu0 %v2105
    %2240 = vmatprep.subr.bf16.mxu0 0
    %2241 = vmatpush1.bf16.msra.mxu0 0
    %2242 = vmatprep.subr.bf16.mxu0 0
    %2243 = vmatpush1.bf16.msra.mxu0 0
    %2244 = vmatprep.subr.bf16.mxu0 0
    %2245 = vmatpush1.bf16.msra.mxu0 0
    %2246 = vmatprep.subr.bf16.mxu0 0
    %2247 = vmatpush1.bf16.msra.mxu0 0
    %2248 = vmatprep.subr.bf16.mxu0 0
    %2249 = vmatpush1.bf16.msra.mxu0 0
    %2250 = vmatprep.subr.bf16.mxu0 0
    %2251 = vmatpush1.bf16.msra.mxu0 0
    %2252 = vmatprep.subr.bf16.mxu0 0
    %2253 = vmatpush1.bf16.msra.mxu0 0
    %2254 = vmatprep.subr.bf16.mxu0 0
    %2255 = vmatpush1.bf16.msra.mxu0 0
    %2256 = vmatprep.subr.bf16.mxu0 0
    %2257 = vmatpush1.bf16.msra.mxu0 0
    %2258 = vmatprep.subr.bf16.mxu0 0
    %2259 = vmatpush1.bf16.msra.mxu0 0
    %2260 = vmatprep.subr.bf16.mxu0 0
    %2261 = vmatpush1.bf16.msra.mxu0 0
    %2262 = vmatprep.subr.bf16.mxu0 0
    %2263 = vmatpush1.bf16.msra.mxu0 0
    %2264 = vmatprep.subr.bf16.mxu0 0
    %2265 = vmatpush1.bf16.msra.mxu0 0
    %2266 = vmatprep.subr.bf16.mxu0 0
    %2267 = vmatpush1.bf16.msra.mxu0 0
    %2268 = vmatprep.subr.bf16.mxu0 0
    %2269 = vmatpush1.bf16.msra.mxu0 0
    %2270 = vmatprep.mubr.bf16.mxu0 0
    %2271 = vmatmul.mubr.bf16.gmra.mrb[0].mxu0 %v2236
    %v2272 = vpop.f32.mrb[0].mxu0
    %v2273 = vadd.f32 %v2223, %v2272
    %v2274 = vpop.f32.mrb[0].mxu0
    %v2275 = vadd.f32 %v2223, %v2274
    %v2276 = vpop.f32.mrb[0].mxu0
    %v2277 = vadd.f32 %v2228, %v2276
    %v2278 = vpop.f32.mrb[0].mxu0
    %v2279 = vadd.f32 %v2228, %v2278
    %2280 = vdwg.mxu0
    %2281 = vrot.lane.b32.xlu0 %v2153, 1
    %v2282 = vpop.permute.xlu0 %2281
    %2283 = vrot.lane.b32.xlu0 %v2157, 1
    %v2284 = vpop.permute.xlu0 %2283
    %2285 = vrot.lane.b32.xlu0 %v2155, 1
    %v2286 = vpop.permute.xlu0 %2285
    %2287 = vrot.lane.b32.xlu0 %v2159, 1
    %v2288 = vpop.permute.xlu0 %2287
    %v2289 = vsel %vm378, %v2282, %v2286
    %v2290 = vsel %vm378, %v2284, %v2288
    %v2291 = vsel %vm378, %v2286, %v2282
    %v2292 = vsel %vm378, %v2288, %v2284
    %v2293 = vsel %vm392, 0.0, %v2291
    %v2294 = vsel %vm392, 0.0, %v2289
    %v2295 = vsel %vm392, 0.0, %v2292
    %v2296 = vsel %vm392, 0.0, %v2290
    %v2297 = vadd.f32 %v2273, %v2293
    %v2298 = vadd.f32 %v2275, %v2294
    %v2299 = vadd.f32 %v2277, %v2295
    %v2300 = vadd.f32 %v2279, %v2296
    %2301 = vrot.lane.b32.xlu0 %v2210, 127
    %v2302 = vpop.permute.xlu0 %2301
    %2303 = vrot.lane.b32.xlu0 %v2214, 127
    %v2304 = vpop.permute.xlu0 %2303
    %2305 = vrot.lane.b32.xlu0 %v2212, 127
    %v2306 = vpop.permute.xlu0 %2305
    %2307 = vrot.lane.b32.xlu0 %v2216, 127
    %v2308 = vpop.permute.xlu0 %2307
    %v2309 = vsel %vm425, %v2302, %v2306
    %v2310 = vsel %vm425, %v2304, %v2308
    %v2311 = vsel %vm425, %v2306, %v2302
    %v2312 = vsel %vm425, %v2308, %v2304
    %v2313 = vsel %vm439, 0.0, %v2309
    %v2314 = vsel %vm439, 0.0, %v2311
    %v2315 = vsel %vm439, 0.0, %v2310
    %v2316 = vsel %vm439, 0.0, %v2312
    %v2317 = vadd.f32 %v2297, %v2313
    %v2318 = vadd.f32 %v2298, %v2314
    %v2319 = vadd.f32 %v2299, %v2315
    %v2320 = vadd.f32 %v2300, %v2316
    %vm2321 = vcmask 64512
    %2322 = vst.msk [vmem:[%s15] sm:$0xff] %vm2321, %v2317
    %2323 = vst.msk [vmem:[%s15 + $0x8] sm:$0xff] %vm2321, %v2319
    %s2324 = scalar_lea.vmem %s15, 16
    %2325 = vst.msk [vmem:[%s2324] sm:$0xff] %vm2321, %v2318
    %2326 = vst.msk [vmem:[%s2324 + $0x8] sm:$0xff] %vm2321, %v2320
    // Predicated region
    $region70: #{_lambda_.1} parent=1 // pred_check
      _
    $region71: #{_lambda_.1} parent=1 // pred_check_branch
      %2328 = sbr.rel (0) target = $region73
    $region72: #{_lambda_.1} parent=1 // pred_region
      _
    $region73: #{_lambda_.1} parent=1 // pred_fallthru
      _
    // Predicated region
    $region74: #{_lambda_.1} parent=1 // pred_check
      _
    $region75: #{_lambda_.1} parent=1 // pred_check_branch
      %2330 = sbr.rel (0) target = $region77
    $region76: #{_lambda_.1} parent=1 // pred_region
      _
    $region77: #{_lambda_.1} parent=1 // pred_fallthru
      _
    %2331 = vsyncpa [#allocation3], 1
    %2332 = vsyncpa [#allocation5], 1

</llo_original>
